<compile_context>
chip_gen: v7x
topology: tpu7x:2x2x1
jax: 0.10.0
libtpu: 0.0.40
codegen_flags: <defaults>
</compile_context>

<pallas_src>
import functools
import math

import numpy as np
import jax
import jax.numpy as jnp
from jax import lax
from jax.experimental import pallas as pl
from jax.experimental.pallas import tpu as pltpu


INTENSITY_INDEX = [29, 30, 31, 32, 98, 99, 100, 101, 36, 43, 105, 112, 53, 122]


def _align8(n):
    return ((n + 7) // 8) * 8


# ----------------------------------------------------------------------------
# Packed-slab layout (all offsets static Python ints, passed to the kernel)
# ----------------------------------------------------------------------------
def make_layout(*, seq_len, frame_len, text_len, embed_dim, num_heads,
                hidden_dim, latent_dim, input_dim):
    T, F, S, E, H = seq_len, frame_len, text_len, embed_dim, num_heads
    hd = E // H
    lw = embed_dim                      # lane width of the 64-wide slabs
    # this packed layout needs every 64-wide operand to be exactly `lw` lanes
    assert hidden_dim == lw and 2 * latent_dim == lw and H * T == lw
    assert _align8(F) <= lw

    lay = dict(T=T, F=F, S=S, E=E, H=H, hd=hd, L=latent_dim,
               hidden=hidden_dim, D=input_dim, lanes=lw)

    # ---- data64 slab: per-utterance tensors, (d64_rows, lw) ----
    off = 0

    def row(name, n):
        nonlocal off
        lay[name] = off
        off += n

    row("hid_off", _align8(T))          # wav2vec2 hidden states       (T, E)
    lay["aud_rows"] = _align8(F)
    row("aud_off", lay["aud_rows"])     # emotion2vec frame features   (F, E)
    row("txt_off", _align8(S))          # BERT text features           (S, E)
    row("win_off", _align8(T))          # interp matrix, lanes 0:aud_rows
    row("rsum_off", _align8(T))         # head-sum selection           (T, H*T)
    row("emo_off", 8)                   # normalized emotion embedding (1, hidden)
    lay["d64_rows"] = off

    # ---- data128 slab: (d128_rows, D) ----
    lay["label_off"] = 0
    lay["mask_off"] = _align8(T)
    lay["d128_rows"] = _align8(T) + 8

    # ---- weight slab (constant), (w64_rows, lw) ----
    off = 0
    row("acm_w1", E)                    # audio_content_map layer 1
    row("acm_w2", hidden_dim)           # layer 2, placed into cols L:2L
    row("wq", E)
    row("wk", E)
    row("wv_rt", H * T)                 # folded V/out-proj/head, replicated, transposed
    row("sem_w1", hidden_dim)           # semantic_emotion_map layer 1
    row("sem_w2", hidden_dim)           # layer 2, placed into cols 0:L
    row("mot_w1", input_dim)            # emo_encoder layer 1
    row("mot_w2", hidden_dim)           # layer 2, placed into cols 0:L
    row("dec_w1", 2 * latent_dim)       # decoder layer 1
    lay["w64_rows"] = off

    # ---- 128-wide param slab (constant): 11 bias rows + dec_w2 ----
    for i, name in enumerate(["b_acm1", "b_acm2", "b_q", "b_k", "b_sem1",
                              "b_sem2", "b_mot1", "b_mot2", "b_dec1",
                              "b_dec2", "b_of"]):
        lay[name] = i
    lay["dec_w2"] = 16
    lay["p128_rows"] = 16 + hidden_dim
    return lay


# ----------------------------------------------------------------------------
# Fused forward kernel
# ----------------------------------------------------------------------------
def _sum_all(x):
    return jnp.sum(jnp.sum(x, axis=-1, keepdims=True), axis=-2, keepdims=True)


def _mean_all(x):
    return _sum_all(x) * (1.0 / float(x.shape[0] * x.shape[1]))


def _encoder_mlp(x, w1, b1, w2, b2, slope=0.2):
    # TODO(synk): Encoder/Decoder class bodies not provided; assumed
    # Linear -> LeakyReLU(0.2) -> Linear (slope 0.2 matches the emotion MLP).
    h = jnp.dot(x, w1, preferred_element_type=jnp.float32) + b1
    h = jnp.where(h >= 0.0, h, slope * h)
    return jnp.dot(h, w2, preferred_element_type=jnp.float32) + b2


def _fused_forward_kernel(d64_ref, d128_ref, w64_ref, p128_ref,
                          xrecon_ref, loss_ref, *, lay, inten_scale):
    f32 = jnp.float32
    T, S, E, H, hd = lay["T"], lay["S"], lay["E"], lay["H"], lay["hd"]
    L, HW, D = lay["L"], lay["hidden"], lay["D"]

    def wblk(name, rows):                         # static weight-slab slice
        off = lay[name]
        return w64_ref[off:off + rows, :]

    def bias(name, width):                        # one 128-padded bias row
        r = p128_ref[lay[name]:lay[name] + 1, :]
        return r[:, :width]

    # ---------------- per-utterance data (static slab slices) ----------------
    hidden = d64_ref[lay["hid_off"]:lay["hid_off"] + T, :]                    # (T, E)
    audio_raw = d64_ref[lay["aud_off"]:lay["aud_off"] + lay["aud_rows"], :]   # (Fp, E)
    txt = d64_ref[lay["txt_off"]:lay["txt_off"] + S, :]                       # (S, E)
    w_interp = d64_ref[lay["win_off"]:lay["win_off"] + T, :][:, :lay["aud_rows"]]
    rsum = d64_ref[lay["rsum_off"]:lay["rsum_off"] + T, :]                    # (T, H*T)
    emo_unit = d64_ref[lay["emo_off"]:lay["emo_off"] + 1, :]                  # (1, HW)
    label = d128_ref[lay["label_off"]:lay["label_off"] + T, :]                # (T, D)
    mask = d128_ref[lay["mask_off"]:lay["mask_off"] + 1, :]                   # (1, D)

    # ---------------- weights / biases ----------------
    acm_w1, acm_b1 = wblk("acm_w1", E), bias("b_acm1", HW)
    acm_w2, acm_b2 = wblk("acm_w2", HW), bias("b_acm2", 2 * L)   # cols L:2L live
    wq, bq = wblk("wq", E), bias("b_q", E)
    wk, bk = wblk("wk", E), bias("b_k", E)
    wv_rt = wblk("wv_rt", H * T)
    sem_w1, sem_b1 = wblk("sem_w1", HW), bias("b_sem1", HW)
    sem_w2, sem_b2 = wblk("sem_w2", HW), bias("b_sem2", 2 * L)   # cols 0:L live
    mot_w1, mot_b1 = wblk("mot_w1", D), bias("b_mot1", HW)
    mot_w2, mot_b2 = wblk("mot_w2", HW), bias("b_mot2", 2 * L)   # cols 0:L live
    dec_w1, dec_b1 = wblk("dec_w1", 2 * L), bias("b_dec1", HW)
    dec_w2 = p128_ref[lay["dec_w2"]:lay["dec_w2"] + HW, :]       # (HW, D)
    dec_b2 = bias("b_dec2", D)
    b_of = bias("b_of", 1)                                       # (1, 1)

    # --- audio content branch: Encoder(wav2vec2 hidden states) -> cols L:2L ---
    audio_cont = _encoder_mlp(hidden, acm_w1, acm_b1, acm_w2, acm_b2)          # (T, 2L)

    # --- F.interpolate(mode='linear', align_corners=True) as one matmul ---
    audio_feat = jnp.dot(w_interp, audio_raw, preferred_element_type=f32)      # (T, E)

    # --- fusion predictor: cross-attention with V/out-proj/head folded ---
    # TODO(synk): AudioTextFusion class body not provided; assumed
    # nn.MultiheadAttention-style cross attention followed by Linear(E, 1).
    scale = 1.0 / math.sqrt(hd)
    q = jnp.dot(audio_feat, wq, preferred_element_type=f32) + bq               # (T, E)
    k = jnp.dot(txt, wk, preferred_element_type=f32) + bk                      # (S, E)
    # vrep[h*T+t, s] = (text @ wv_h @ (wo_h @ w_head))[s]  (bias folded into b_of)
    vrep = lax.dot_general(wv_rt, txt, (((1,), (1,)), ((), ())),
                           preferred_element_type=f32)                         # (H*T, S)
    s_list = []
    for h in range(H):                           # static unroll: scores only
        qh = q[:, h * hd:(h + 1) * hd]
        kh = k[:, h * hd:(h + 1) * hd]
        s_list.append(lax.dot_general(qh, kh, (((1,), (1,)), ((), ())),
                                      preferred_element_type=f32) * scale)
    s_all = jnp.concatenate(s_list, axis=0)                                    # (H*T, S)
    # one batched softmax for all heads (single max/exp/sum/reciprocal pass)
    s_all = s_all - jnp.max(s_all, axis=-1, keepdims=True)
    p = jnp.exp(s_all)
    p = p * pl.reciprocal(jnp.sum(p, axis=-1, keepdims=True), approx=True)
    contrib = jnp.sum(p * vrep, axis=-1, keepdims=True)                        # (H*T, 1)
    pred_intensity = jnp.dot(rsum, contrib, preferred_element_type=f32) + b_of  # (T, 1)

    # --- emotion pathway (embedding MLP + its norm hoisted to the wrapper) ---
    emo_feature = emo_unit * pred_intensity                                    # (T, HW)
    emo_feature = _encoder_mlp(emo_feature, sem_w1, sem_b1, sem_w2, sem_b2)    # cols 0:L

    # --- motion emotion encoder on the ground-truth rig ---
    motion_emo = _encoder_mlp(label, mot_w1, mot_b1, mot_w2, mot_b2)           # cols 0:L

    # --- decoder: concat([emo, cont]) realized by disjoint column placement ---
    cat = emo_feature + audio_cont                                             # (T, 2L)
    d1 = jnp.dot(cat, dec_w1, preferred_element_type=f32) + dec_b1
    d1 = jnp.where(d1 >= 0.0, d1, 0.2 * d1)
    x_recon = jnp.dot(d1, dec_w2, preferred_element_type=f32) + dec_b2         # (T, D)
    xrecon_ref[...] = x_recon

    # --- get_intensity + the three losses ---
    gt_int = jnp.sum(jnp.abs(label) * mask, axis=-1, keepdims=True) * inten_scale
    out_int = jnp.sum(jnp.abs(x_recon) * mask, axis=-1, keepdims=True) * inten_scale
    inten_loss = _mean_all((out_int - gt_int) ** 2)
    recon_loss = _mean_all((x_recon - label) ** 2)

    # cosine over the flattened tensors (matches torch .view(-1)); padded zero
    # columns contribute nothing to dot products / norms.
    dot_ab = _sum_all(emo_feature * motion_emo)
    na2 = _sum_all(emo_feature * emo_feature)
    nb2 = _sum_all(motion_emo * motion_emo)
    eps2 = 1e-16
    cos = dot_ab * lax.rsqrt(jnp.maximum(na2, eps2)) * lax.rsqrt(jnp.maximum(nb2, eps2))
    emb_loss = 1.0 - cos
    total = recon_loss + 0.1 * emb_loss + 0.1 * inten_loss

    # pack the four scalars into one lane-dense output row (no concat needed)
    lane = lax.broadcasted_iota(jnp.int32, (1, D), 1)
    loss_row = (jnp.where(lane == 0, recon_loss, 0.0)
                + jnp.where(lane == 1, emb_loss, 0.0)
                + jnp.where(lane == 2, inten_loss, 0.0)
                + jnp.where(lane == 3, total, 0.0))
    loss_ref[...] = loss_row


def fused_forward(d64, d128, w64, p128, lay, *, inten_scale=0.1):
    T, D = lay["T"], lay["D"]
    vmem = pl.BlockSpec(memory_space=pltpu.MemorySpace.VMEM)
    kern = functools.partial(_fused_forward_kernel, lay=lay, inten_scale=inten_scale)
    # No grid: everything (< 0.5 MiB) stays VMEM resident; per the review no
    # pipelining / tiling is added.  (On v7x a leading batch grid axis marked
    # "parallel" would shard utterances across both TensorCores; B=1 here.)
    x_recon, losses = pl.pallas_call(
        kern,
        out_shape=(jax.ShapeDtypeStruct((T, D), jnp.float32),
                   jax.ShapeDtypeStruct((1, D), jnp.float32)),
        in_specs=[vmem, vmem, vmem, vmem],
        out_specs=(vmem, vmem),
    )(d64, d128, w64, p128)
    return x_recon, (losses[0, 0], losses[0, 1], losses[0, 2], losses[0, 3])


# ----------------------------------------------------------------------------
# Host-side parameter construction, folding and slab packing
# ----------------------------------------------------------------------------
def make_linear(key, din, dout):
    kw, kb = jax.random.split(key)
    w = jax.random.normal(kw, (din, dout), jnp.float32) / math.sqrt(din)
    b = jax.random.normal(kb, (1, dout), jnp.float32) * 0.01
    return w, b


def make_encoder(key, din, dhid, dout):
    k1, k2 = jax.random.split(key)
    return make_linear(k1, din, dhid), make_linear(k2, dhid, dout)


def pack_params(params, lay):
    """Fold + pack every constant parameter into two slabs (built once)."""
    T, E, H, hd, L = lay["T"], lay["E"], lay["H"], lay["hd"], lay["L"]
    HW, D, lw = lay["hidden"], lay["D"], lay["lanes"]

    acm1, acm2 = params["audio_content_map"]
    sem1, sem2 = params["semantic_emotion_map"]
    mot1, mot2 = params["emo_encoder"]
    dec1, dec2 = params["decoder"]
    (wq, bq), (wk, bk), (wv, bv), (wo, bo) = params["fusion_attn"]
    w_head, b_head = params["fusion_head"]

    # fold attention out-proj and the Linear(E,1) head into the V projection
    w_of = np.asarray(wo) @ np.asarray(w_head)               # (E, 1)
    wv_np, bv_np = np.asarray(wv), np.asarray(bv)
    wv_fold = np.zeros((E, H), np.float32)
    bv_fold = np.zeros((H,), np.float32)
    for h in range(H):
        sl = slice(h * hd, (h + 1) * hd)
        wv_fold[:, h] = (wv_np[:, sl] @ w_of[sl]).reshape(-1)
        bv_fold[h] = (bv_np[0:1, sl] @ w_of[sl]).item()
    # replicate per (head, query-row) and pre-transpose -> (H*T, E)
    wv_rt = np.repeat(wv_fold, T, axis=1).T.astype(np.float32)
    # softmax rows sum to 1 -> the V bias and out-proj/head biases collapse to a scalar
    b_of = ((np.asarray(bo) @ np.asarray(w_head)).item()
            + np.asarray(b_head).item() + bv_fold.sum().item())

    # second encoder layers placed into the decoder's concat layout:
    # columns [0:L] = emotion branch, [L:2L] = content branch.
    def place(wb, col0):
        w, b = np.asarray(wb[0]), np.asarray(wb[1])
        wp = np.zeros((w.shape[0], lw), np.float32)
        bp = np.zeros((1, lw), np.float32)
        wp[:, col0:col0 + w.shape[1]] = w
        bp[:, col0:col0 + b.shape[1]] = b
        return wp, bp

    acm_w2p, acm_b2p = place(acm2, L)      # content -> cols L:2L
    sem_w2p, sem_b2p = place(sem2, 0)      # emotion -> cols 0:L
    mot_w2p, mot_b2p = place(mot2, 0)

    w64 = np.zeros((lay["w64_rows"], lw), np.float32)

    def put64(name, w):
        w = np.asarray(w)
        w64[lay[name]:lay[name] + w.shape[0], :w.shape[1]] = w

    put64("acm_w1", acm1[0]); put64("acm_w2", acm_w2p)
    put64("wq", wq);          put64("wk", wk)
    put64("wv_rt", wv_rt)
    put64("sem_w1", sem1[0]); put64("sem_w2", sem_w2p)
    put64("mot_w1", mot1[0]); put64("mot_w2", mot_w2p)
    put64("dec_w1", dec1[0])

    p128 = np.zeros((lay["p128_rows"], D), np.float32)

    def putb(name, b):
        b = np.asarray(b).reshape(-1)
        p128[lay[name], :b.shape[0]] = b

    putb("b_acm1", acm1[1]); putb("b_acm2", acm_b2p)
    putb("b_q", bq);         putb("b_k", bk)
    putb("b_sem1", sem1[1]); putb("b_sem2", sem_b2p)
    putb("b_mot1", mot1[1]); putb("b_mot2", mot_b2p)
    putb("b_dec1", dec1[1]); putb("b_dec2", dec2[1])
    p128[lay["b_of"], 0] = b_of
    p128[lay["dec_w2"]:lay["dec_w2"] + HW, :] = np.asarray(dec2[0])
    return jnp.asarray(w64), jnp.asarray(p128)


def emotion_unit_vector(params, emo_id):
    """nn.Sequential(Embedding(7,256), Linear(256,512), LeakyReLU(0.2),
    Linear(512,hidden)) followed by / (||.|| + 1e-8): depends only on emo_id and
    parameters, so it is hoisted out of the kernel (removes ~640 KiB of DMA)."""
    emb = params["emo_table"][emo_id][None, :]
    (w1, b1), (w2, b2) = params["emo_mlp"]
    h = emb @ w1 + b1
    h = jnp.where(h >= 0.0, h, 0.2 * h)
    emo_embed = h @ w2 + b2
    norm = jnp.sqrt(jnp.sum(emo_embed * emo_embed, axis=-1, keepdims=True))
    return emo_embed / (norm + 1e-8)                          # (1, hidden)


def pack_data(hidden_states, audio_raw, text_feature, label, emo_unit,
              w_interp, rsum, inten_mask, lay):
    """Per-utterance tensors packed into two slabs (2 input DMAs)."""
    lw = lay["lanes"]
    d64 = jnp.zeros((lay["d64_rows"], lw), jnp.float32)
    d64 = d64.at[lay["hid_off"]:lay["hid_off"] + hidden_states.shape[0], :].set(hidden_states)
    d64 = d64.at[lay["aud_off"]:lay["aud_off"] + audio_raw.shape[0], :].set(audio_raw)
    d64 = d64.at[lay["txt_off"]:lay["txt_off"] + text_feature.shape[0], :].set(text_feature)
    d64 = d64.at[lay["win_off"]:lay["win_off"] + w_interp.shape[0],
                 :w_interp.shape[1]].set(w_interp)
    d64 = d64.at[lay["rsum_off"]:lay["rsum_off"] + rsum.shape[0],
                 :rsum.shape[1]].set(rsum)
    d64 = d64.at[lay["emo_off"], :emo_unit.shape[1]].set(emo_unit[0])

    d128 = jnp.zeros((lay["d128_rows"], lay["D"]), jnp.float32)
    d128 = d128.at[lay["label_off"]:lay["label_off"] + label.shape[0], :].set(label)
    d128 = d128.at[lay["mask_off"], :].set(inten_mask[0])
    return d64, d128


def build_interp_matrix(in_len, out_len):
    """F.interpolate(mode='linear', align_corners=True) as an (out_len, in_len)
    matrix, so the resampling is a single MXU matmul inside the kernel."""
    if out_len == 1:
        pos = np.zeros((1,), np.float64)
    else:
        pos = np.linspace(0.0, in_len - 1.0, out_len)
    lo = np.floor(pos).astype(np.int64)
    hi = np.minimum(lo + 1, in_len - 1)
    frac = pos - lo
    w = np.zeros((out_len, in_len), np.float32)
    rows = np.arange(out_len)
    w[rows, lo] += (1.0 - frac).astype(np.float32)
    w[rows, hi] += frac.astype(np.float32)
    return jnp.asarray(w)


def build_head_sum_matrix(T, H):
    """rsum[t, h*T + t] = 1: sums the per-head contributions with one matmul."""
    r = np.zeros((T, H * T), np.float32)
    for h in range(H):
        r[np.arange(T), h * T + np.arange(T)] = 1.0
    return jnp.asarray(r)


def build_intensity_mask(input_dim):
    m = np.zeros((1, input_dim), np.float32)
    m[0, INTENSITY_INDEX] = 1.0
    return jnp.asarray(m)


# ----------------------------------------------------------------------------
# Main
# ----------------------------------------------------------------------------
if __name__ == "__main__":
    # Small synthetic dims consistent with the module's forward (B = 1 squeezed).
    INPUT_DIM = 128     # rig dim (must cover intensity index 122)
    HIDDEN_DIM = 64
    LATENT_DIM = 32
    EMBED_DIM = 64      # synthetic stand-in for wav2vec2/BERT hidden_size
    SEQ_LEN = 8         # rig seq_len
    FRAME_LEN = 12      # emotion2vec frame count before interpolation
    TEXT_LEN = 6        # tokenized text length
    NUM_HEADS = 8

    lay = make_layout(seq_len=SEQ_LEN, frame_len=FRAME_LEN, text_len=TEXT_LEN,
                      embed_dim=EMBED_DIM, num_heads=NUM_HEADS,
                      hidden_dim=HIDDEN_DIM, latent_dim=LATENT_DIM,
                      input_dim=INPUT_DIM)

    root = jax.random.PRNGKey(0)
    keys = jax.random.split(root, 16)

    params = {
        "audio_content_map": make_encoder(keys[0], EMBED_DIM, HIDDEN_DIM, LATENT_DIM),
        "semantic_emotion_map": make_encoder(keys[1], HIDDEN_DIM, HIDDEN_DIM, LATENT_DIM),
        "emo_encoder": make_encoder(keys[2], INPUT_DIM, HIDDEN_DIM, LATENT_DIM),
        "decoder": make_encoder(keys[3], 2 * LATENT_DIM, HIDDEN_DIM, INPUT_DIM),
        "fusion_attn": (make_linear(keys[4], EMBED_DIM, EMBED_DIM),
                        make_linear(keys[5], EMBED_DIM, EMBED_DIM),
                        make_linear(keys[6], EMBED_DIM, EMBED_DIM),
                        make_linear(keys[7], EMBED_DIM, EMBED_DIM)),
        "fusion_head": make_linear(keys[8], EMBED_DIM, 1),
        "emo_table": jax.random.normal(keys[9], (7, 256), jnp.float32),
        "emo_mlp": (make_linear(keys[10], 256, 512),
                    make_linear(keys[11], 512, HIDDEN_DIM)),
    }

    # TODO(synk): Wav2Vec2 / emotion2vec / BERT / tokenizer / ASR have no Pallas
    # equivalent; their outputs are supplied as synthetic inputs below.
    hidden_states = jax.random.normal(keys[12], (SEQ_LEN, EMBED_DIM), jnp.float32)
    audio_feature_raw = jax.random.normal(keys[13], (FRAME_LEN, EMBED_DIM), jnp.float32)
    text_feature = jax.random.normal(keys[14], (TEXT_LEN, EMBED_DIM), jnp.float32)
    label = jax.random.normal(keys[15], (SEQ_LEN, INPUT_DIM), jnp.float32)
    emo_id = 3  # 'hap'

    # constant / host-side prep (done once per model)
    w64, p128 = pack_params(params, lay)
    # per-utterance prep
    emo_unit = emotion_unit_vector(params, emo_id)
    w_interp = build_interp_matrix(FRAME_LEN, SEQ_LEN)
    rsum = build_head_sum_matrix(SEQ_LEN, NUM_HEADS)
    inten_mask = build_intensity_mask(INPUT_DIM)
    d64, d128 = pack_data(hidden_states, audio_feature_raw, text_feature,
                          label, emo_unit, w_interp, rsum, inten_mask, lay)

    x_recon, (recon_loss, emb_loss, inten_loss, loss) = fused_forward(
        d64, d128, w64, p128, lay, inten_scale=0.1)

    jax.block_until_ready((x_recon, recon_loss, emb_loss, inten_loss, loss))
    assert x_recon.shape == (SEQ_LEN, INPUT_DIM)
    assert bool(jnp.isfinite(loss))
    assert bool(jnp.isfinite(recon_loss))
    assert bool(jnp.isfinite(emb_loss))
    assert bool(jnp.isfinite(inten_loss))
    print("KERNEL_OK")
</pallas_src>

<mosaic_0001>
module attributes {stable_mosaic.version = 11 : i64} {
  func.func @_fused_forward_kernel(%arg0: memref<56x64xf32, #tpu.memory_space<vmem>>, %arg1: memref<16x128xf32, #tpu.memory_space<vmem>>, %arg2: memref<704x64xf32, #tpu.memory_space<vmem>>, %arg3: memref<80x128xf32, #tpu.memory_space<vmem>>, %arg4: memref<8x128xf32, #tpu.memory_space<vmem>>, %arg5: memref<1x128xf32, #tpu.memory_space<vmem>>) attributes {dimension_semantics = [], scalar_prefetch = 0 : i64, scratch_operands = 0 : i64, tpu.core_type = #tpu.core_type<tc>} {
    %c0 = arith.constant 0 : index
    %c0_0 = arith.constant 0 : index
    %0 = vector.load %arg0[%c0, %c0_0] : memref<56x64xf32, #tpu.memory_space<vmem>>, vector<8x64xf32>
    %c8 = arith.constant 8 : index
    %c0_1 = arith.constant 0 : index
    %1 = vector.load %arg0[%c8, %c0_1] : memref<56x64xf32, #tpu.memory_space<vmem>>, vector<16x64xf32>
    %c24 = arith.constant 24 : index
    %c0_2 = arith.constant 0 : index
    %2 = vector.load %arg0[%c24, %c0_2] : memref<56x64xf32, #tpu.memory_space<vmem>>, vector<6x64xf32>
    %c32 = arith.constant 32 : index
    %c0_3 = arith.constant 0 : index
    %3 = vector.load %arg0[%c32, %c0_3] : memref<56x64xf32, #tpu.memory_space<vmem>>, vector<8x64xf32>
    %4 = vector.extract_strided_slice %3 {offsets = [0, 0], sizes = [8, 16], strides = [1, 1]} : vector<8x64xf32> to vector<8x16xf32>
    %c40 = arith.constant 40 : index
    %c0_4 = arith.constant 0 : index
    %5 = vector.load %arg0[%c40, %c0_4] : memref<56x64xf32, #tpu.memory_space<vmem>>, vector<8x64xf32>
    %c48 = arith.constant 48 : index
    %c0_5 = arith.constant 0 : index
    %6 = vector.load %arg0[%c48, %c0_5] : memref<56x64xf32, #tpu.memory_space<vmem>>, vector<1x64xf32>
    %c0_6 = arith.constant 0 : index
    %c0_7 = arith.constant 0 : index
    %7 = vector.load %arg1[%c0_6, %c0_7] : memref<16x128xf32, #tpu.memory_space<vmem>>, vector<8x128xf32>
    %c8_8 = arith.constant 8 : index
    %c0_9 = arith.constant 0 : index
    %8 = vector.load %arg1[%c8_8, %c0_9] : memref<16x128xf32, #tpu.memory_space<vmem>>, vector<1x128xf32>
    %c0_10 = arith.constant 0 : index
    %c0_11 = arith.constant 0 : index
    %9 = vector.load %arg2[%c0_10, %c0_11] : memref<704x64xf32, #tpu.memory_space<vmem>>, vector<64x64xf32>
    %c0_12 = arith.constant 0 : index
    %c0_13 = arith.constant 0 : index
    %10 = vector.load %arg3[%c0_12, %c0_13] : memref<80x128xf32, #tpu.memory_space<vmem>>, vector<1x128xf32>
    %11 = vector.extract_strided_slice %10 {offsets = [0, 0], sizes = [1, 64], strides = [1, 1]} : vector<1x128xf32> to vector<1x64xf32>
    %c64 = arith.constant 64 : index
    %c0_14 = arith.constant 0 : index
    %12 = vector.load %arg2[%c64, %c0_14] : memref<704x64xf32, #tpu.memory_space<vmem>>, vector<64x64xf32>
    %c1 = arith.constant 1 : index
    %c0_15 = arith.constant 0 : index
    %13 = vector.load %arg3[%c1, %c0_15] : memref<80x128xf32, #tpu.memory_space<vmem>>, vector<1x128xf32>
    %14 = vector.extract_strided_slice %13 {offsets = [0, 0], sizes = [1, 64], strides = [1, 1]} : vector<1x128xf32> to vector<1x64xf32>
    %c128 = arith.constant 128 : index
    %c0_16 = arith.constant 0 : index
    %15 = vector.load %arg2[%c128, %c0_16] : memref<704x64xf32, #tpu.memory_space<vmem>>, vector<64x64xf32>
    %c2 = arith.constant 2 : index
    %c0_17 = arith.constant 0 : index
    %16 = vector.load %arg3[%c2, %c0_17] : memref<80x128xf32, #tpu.memory_space<vmem>>, vector<1x128xf32>
    %17 = vector.extract_strided_slice %16 {offsets = [0, 0], sizes = [1, 64], strides = [1, 1]} : vector<1x128xf32> to vector<1x64xf32>
    %c192 = arith.constant 192 : index
    %c0_18 = arith.constant 0 : index
    %18 = vector.load %arg2[%c192, %c0_18] : memref<704x64xf32, #tpu.memory_space<vmem>>, vector<64x64xf32>
    %c3 = arith.constant 3 : index
    %c0_19 = arith.constant 0 : index
    %19 = vector.load %arg3[%c3, %c0_19] : memref<80x128xf32, #tpu.memory_space<vmem>>, vector<1x128xf32>
    %20 = vector.extract_strided_slice %19 {offsets = [0, 0], sizes = [1, 64], strides = [1, 1]} : vector<1x128xf32> to vector<1x64xf32>
    %c256 = arith.constant 256 : index
    %c0_20 = arith.constant 0 : index
    %21 = vector.load %arg2[%c256, %c0_20] : memref<704x64xf32, #tpu.memory_space<vmem>>, vector<64x64xf32>
    %c320 = arith.constant 320 : index
    %c0_21 = arith.constant 0 : index
    %22 = vector.load %arg2[%c320, %c0_21] : memref<704x64xf32, #tpu.memory_space<vmem>>, vector<64x64xf32>
    %c4 = arith.constant 4 : index
    %c0_22 = arith.constant 0 : index
    %23 = vector.load %arg3[%c4, %c0_22] : memref<80x128xf32, #tpu.memory_space<vmem>>, vector<1x128xf32>
    %24 = vector.extract_strided_slice %23 {offsets = [0, 0], sizes = [1, 64], strides = [1, 1]} : vector<1x128xf32> to vector<1x64xf32>
    %c384 = arith.constant 384 : index
    %c0_23 = arith.constant 0 : index
    %25 = vector.load %arg2[%c384, %c0_23] : memref<704x64xf32, #tpu.memory_space<vmem>>, vector<64x64xf32>
    %c5 = arith.constant 5 : index
    %c0_24 = arith.constant 0 : index
    %26 = vector.load %arg3[%c5, %c0_24] : memref<80x128xf32, #tpu.memory_space<vmem>>, vector<1x128xf32>
    %27 = vector.extract_strided_slice %26 {offsets = [0, 0], sizes = [1, 64], strides = [1, 1]} : vector<1x128xf32> to vector<1x64xf32>
    %c448 = arith.constant 448 : index
    %c0_25 = arith.constant 0 : index
    %28 = vector.load %arg2[%c448, %c0_25] : memref<704x64xf32, #tpu.memory_space<vmem>>, vector<128x64xf32>
    %c6 = arith.constant 6 : index
    %c0_26 = arith.constant 0 : index
    %29 = vector.load %arg3[%c6, %c0_26] : memref<80x128xf32, #tpu.memory_space<vmem>>, vector<1x128xf32>
    %30 = vector.extract_strided_slice %29 {offsets = [0, 0], sizes = [1, 64], strides = [1, 1]} : vector<1x128xf32> to vector<1x64xf32>
    %c576 = arith.constant 576 : index
    %c0_27 = arith.constant 0 : index
    %31 = vector.load %arg2[%c576, %c0_27] : memref<704x64xf32, #tpu.memory_space<vmem>>, vector<64x64xf32>
    %c7 = arith.constant 7 : index
    %c0_28 = arith.constant 0 : index
    %32 = vector.load %arg3[%c7, %c0_28] : memref<80x128xf32, #tpu.memory_space<vmem>>, vector<1x128xf32>
    %33 = vector.extract_strided_slice %32 {offsets = [0, 0], sizes = [1, 64], strides = [1, 1]} : vector<1x128xf32> to vector<1x64xf32>
    %c640 = arith.constant 640 : index
    %c0_29 = arith.constant 0 : index
    %34 = vector.load %arg2[%c640, %c0_29] : memref<704x64xf32, #tpu.memory_space<vmem>>, vector<64x64xf32>
    %c8_30 = arith.constant 8 : index
    %c0_31 = arith.constant 0 : index
    %35 = vector.load %arg3[%c8_30, %c0_31] : memref<80x128xf32, #tpu.memory_space<vmem>>, vector<1x128xf32>
    %36 = vector.extract_strided_slice %35 {offsets = [0, 0], sizes = [1, 64], strides = [1, 1]} : vector<1x128xf32> to vector<1x64xf32>
    %c16 = arith.constant 16 : index
    %c0_32 = arith.constant 0 : index
    %37 = vector.load %arg3[%c16, %c0_32] : memref<80x128xf32, #tpu.memory_space<vmem>>, vector<64x128xf32>
    %c9 = arith.constant 9 : index
    %c0_33 = arith.constant 0 : index
    %38 = vector.load %arg3[%c9, %c0_33] : memref<80x128xf32, #tpu.memory_space<vmem>>, vector<1x128xf32>
    %c10 = arith.constant 10 : index
    %c0_34 = arith.constant 0 : index
    %39 = vector.load %arg3[%c10, %c0_34] : memref<80x128xf32, #tpu.memory_space<vmem>>, vector<1x128xf32>
    %40 = vector.extract_strided_slice %39 {offsets = [0, 0], sizes = [1, 1], strides = [1, 1]} : vector<1x128xf32> to vector<1x1xf32>
    %cst = arith.constant dense<0.000000e+00> : vector<8x64xf32>
    %41 = tpu.matmul %0, %9, %cst {dimension_numbers = #tpu.dot_dimension_numbers<[1], [0], [0], [1], [0, 0, 1, 1], [], []>} : vector<8x64xf32>, vector<64x64xf32>, vector<8x64xf32> -> vector<8x64xf32>
    %42 = vector.broadcast %11 : vector<1x64xf32> to vector<8x64xf32>
    %43 = arith.addf %41, %42 : vector<8x64xf32>
    %cst_35 = arith.constant 0.000000e+00 : f32
    %44 = vector.broadcast %cst_35 : f32 to vector<8x64xf32>
    %45 = arith.cmpf oge, %43, %44 : vector<8x64xf32>
    %cst_36 = arith.constant 2.000000e-01 : f32
    %46 = vector.broadcast %cst_36 : f32 to vector<8x64xf32>
    %47 = arith.mulf %46, %43 : vector<8x64xf32>
    %48 = arith.select %45, %43, %47 : vector<8x64xi1>, vector<8x64xf32>
    %cst_37 = arith.constant dense<0.000000e+00> : vector<8x64xf32>
    %49 = tpu.matmul %48, %12, %cst_37 {dimension_numbers = #tpu.dot_dimension_numbers<[1], [0], [0], [1], [0, 0, 1, 1], [], []>} : vector<8x64xf32>, vector<64x64xf32>, vector<8x64xf32> -> vector<8x64xf32>
    %50 = vector.broadcast %14 : vector<1x64xf32> to vector<8x64xf32>
    %51 = arith.addf %49, %50 : vector<8x64xf32>
    %cst_38 = arith.constant dense<0.000000e+00> : vector<8x64xf32>
    %52 = tpu.matmul %4, %1, %cst_38 {dimension_numbers = #tpu.dot_dimension_numbers<[1], [0], [0], [1], [0, 0, 1, 1], [], []>} : vector<8x16xf32>, vector<16x64xf32>, vector<8x64xf32> -> vector<8x64xf32>
    %cst_39 = arith.constant dense<0.000000e+00> : vector<8x64xf32>
    %53 = tpu.matmul %52, %15, %cst_39 {dimension_numbers = #tpu.dot_dimension_numbers<[1], [0], [0], [1], [0, 0, 1, 1], [], []>} : vector<8x64xf32>, vector<64x64xf32>, vector<8x64xf32> -> vector<8x64xf32>
    %54 = vector.broadcast %17 : vector<1x64xf32> to vector<8x64xf32>
    %55 = arith.addf %53, %54 : vector<8x64xf32>
    %cst_40 = arith.constant dense<0.000000e+00> : vector<6x64xf32>
    %56 = tpu.matmul %2, %18, %cst_40 {dimension_numbers = #tpu.dot_dimension_numbers<[1], [0], [0], [1], [0, 0, 1, 1], [], []>} : vector<6x64xf32>, vector<64x64xf32>, vector<6x64xf32> -> vector<6x64xf32>
    %57 = vector.broadcast %20 : vector<1x64xf32> to vector<6x64xf32>
    %58 = arith.addf %56, %57 : vector<6x64xf32>
    %cst_41 = arith.constant dense<0.000000e+00> : vector<64x6xf32>
    %59 = tpu.matmul %21, %2, %cst_41 {dimension_numbers = #tpu.dot_dimension_numbers<[1], [1], [0], [0], [0, 0, 1, 0], [], []>} : vector<64x64xf32>, vector<6x64xf32>, vector<64x6xf32> -> vector<64x6xf32>
    %60 = vector.extract_strided_slice %55 {offsets = [0, 0], sizes = [8, 8], strides = [1, 1]} : vector<8x64xf32> to vector<8x8xf32>
    %61 = vector.extract_strided_slice %58 {offsets = [0, 0], sizes = [6, 8], strides = [1, 1]} : vector<6x64xf32> to vector<6x8xf32>
    %cst_42 = arith.constant dense<0.000000e+00> : vector<8x6xf32>
    %62 = tpu.matmul %60, %61, %cst_42 {dimension_numbers = #tpu.dot_dimension_numbers<[1], [1], [0], [0], [0, 0, 1, 0], [], []>} : vector<8x8xf32>, vector<6x8xf32>, vector<8x6xf32> -> vector<8x6xf32>
    %cst_43 = arith.constant 0.353553385 : f32
    %63 = vector.broadcast %cst_43 : f32 to vector<8x6xf32>
    %64 = arith.mulf %62, %63 : vector<8x6xf32>
    %65 = vector.extract_strided_slice %55 {offsets = [0, 8], sizes = [8, 8], strides = [1, 1]} : vector<8x64xf32> to vector<8x8xf32>
    %66 = vector.extract_strided_slice %58 {offsets = [0, 8], sizes = [6, 8], strides = [1, 1]} : vector<6x64xf32> to vector<6x8xf32>
    %cst_44 = arith.constant dense<0.000000e+00> : vector<8x6xf32>
    %67 = tpu.matmul %65, %66, %cst_44 {dimension_numbers = #tpu.dot_dimension_numbers<[1], [1], [0], [0], [0, 0, 1, 0], [], []>} : vector<8x8xf32>, vector<6x8xf32>, vector<8x6xf32> -> vector<8x6xf32>
    %cst_45 = arith.constant 0.353553385 : f32
    %68 = vector.broadcast %cst_45 : f32 to vector<8x6xf32>
    %69 = arith.mulf %67, %68 : vector<8x6xf32>
    %70 = vector.extract_strided_slice %55 {offsets = [0, 16], sizes = [8, 8], strides = [1, 1]} : vector<8x64xf32> to vector<8x8xf32>
    %71 = vector.extract_strided_slice %58 {offsets = [0, 16], sizes = [6, 8], strides = [1, 1]} : vector<6x64xf32> to vector<6x8xf32>
    %cst_46 = arith.constant dense<0.000000e+00> : vector<8x6xf32>
    %72 = tpu.matmul %70, %71, %cst_46 {dimension_numbers = #tpu.dot_dimension_numbers<[1], [1], [0], [0], [0, 0, 1, 0], [], []>} : vector<8x8xf32>, vector<6x8xf32>, vector<8x6xf32> -> vector<8x6xf32>
    %cst_47 = arith.constant 0.353553385 : f32
    %73 = vector.broadcast %cst_47 : f32 to vector<8x6xf32>
    %74 = arith.mulf %72, %73 : vector<8x6xf32>
    %75 = vector.extract_strided_slice %55 {offsets = [0, 24], sizes = [8, 8], strides = [1, 1]} : vector<8x64xf32> to vector<8x8xf32>
    %76 = vector.extract_strided_slice %58 {offsets = [0, 24], sizes = [6, 8], strides = [1, 1]} : vector<6x64xf32> to vector<6x8xf32>
    %cst_48 = arith.constant dense<0.000000e+00> : vector<8x6xf32>
    %77 = tpu.matmul %75, %76, %cst_48 {dimension_numbers = #tpu.dot_dimension_numbers<[1], [1], [0], [0], [0, 0, 1, 0], [], []>} : vector<8x8xf32>, vector<6x8xf32>, vector<8x6xf32> -> vector<8x6xf32>
    %cst_49 = arith.constant 0.353553385 : f32
    %78 = vector.broadcast %cst_49 : f32 to vector<8x6xf32>
    %79 = arith.mulf %77, %78 : vector<8x6xf32>
    %80 = vector.extract_strided_slice %55 {offsets = [0, 32], sizes = [8, 8], strides = [1, 1]} : vector<8x64xf32> to vector<8x8xf32>
    %81 = vector.extract_strided_slice %58 {offsets = [0, 32], sizes = [6, 8], strides = [1, 1]} : vector<6x64xf32> to vector<6x8xf32>
    %cst_50 = arith.constant dense<0.000000e+00> : vector<8x6xf32>
    %82 = tpu.matmul %80, %81, %cst_50 {dimension_numbers = #tpu.dot_dimension_numbers<[1], [1], [0], [0], [0, 0, 1, 0], [], []>} : vector<8x8xf32>, vector<6x8xf32>, vector<8x6xf32> -> vector<8x6xf32>
    %cst_51 = arith.constant 0.353553385 : f32
    %83 = vector.broadcast %cst_51 : f32 to vector<8x6xf32>
    %84 = arith.mulf %82, %83 : vector<8x6xf32>
    %85 = vector.extract_strided_slice %55 {offsets = [0, 40], sizes = [8, 8], strides = [1, 1]} : vector<8x64xf32> to vector<8x8xf32>
    %86 = vector.extract_strided_slice %58 {offsets = [0, 40], sizes = [6, 8], strides = [1, 1]} : vector<6x64xf32> to vector<6x8xf32>
    %cst_52 = arith.constant dense<0.000000e+00> : vector<8x6xf32>
    %87 = tpu.matmul %85, %86, %cst_52 {dimension_numbers = #tpu.dot_dimension_numbers<[1], [1], [0], [0], [0, 0, 1, 0], [], []>} : vector<8x8xf32>, vector<6x8xf32>, vector<8x6xf32> -> vector<8x6xf32>
    %cst_53 = arith.constant 0.353553385 : f32
    %88 = vector.broadcast %cst_53 : f32 to vector<8x6xf32>
    %89 = arith.mulf %87, %88 : vector<8x6xf32>
    %90 = vector.extract_strided_slice %55 {offsets = [0, 48], sizes = [8, 8], strides = [1, 1]} : vector<8x64xf32> to vector<8x8xf32>
    %91 = vector.extract_strided_slice %58 {offsets = [0, 48], sizes = [6, 8], strides = [1, 1]} : vector<6x64xf32> to vector<6x8xf32>
    %cst_54 = arith.constant dense<0.000000e+00> : vector<8x6xf32>
    %92 = tpu.matmul %90, %91, %cst_54 {dimension_numbers = #tpu.dot_dimension_numbers<[1], [1], [0], [0], [0, 0, 1, 0], [], []>} : vector<8x8xf32>, vector<6x8xf32>, vector<8x6xf32> -> vector<8x6xf32>
    %cst_55 = arith.constant 0.353553385 : f32
    %93 = vector.broadcast %cst_55 : f32 to vector<8x6xf32>
    %94 = arith.mulf %92, %93 : vector<8x6xf32>
    %95 = vector.extract_strided_slice %55 {offsets = [0, 56], sizes = [8, 8], strides = [1, 1]} : vector<8x64xf32> to vector<8x8xf32>
    %96 = vector.extract_strided_slice %58 {offsets = [0, 56], sizes = [6, 8], strides = [1, 1]} : vector<6x64xf32> to vector<6x8xf32>
    %cst_56 = arith.constant dense<0.000000e+00> : vector<8x6xf32>
    %97 = tpu.matmul %95, %96, %cst_56 {dimension_numbers = #tpu.dot_dimension_numbers<[1], [1], [0], [0], [0, 0, 1, 0], [], []>} : vector<8x8xf32>, vector<6x8xf32>, vector<8x6xf32> -> vector<8x6xf32>
    %cst_57 = arith.constant 0.353553385 : f32
    %98 = vector.broadcast %cst_57 : f32 to vector<8x6xf32>
    %99 = arith.mulf %97, %98 : vector<8x6xf32>
    %100 = tpu.concatenate %64, %69, %74, %79, %84, %89, %94, %99 in 0 : vector<8x6xf32>, vector<8x6xf32>, vector<8x6xf32>, vector<8x6xf32>, vector<8x6xf32>, vector<8x6xf32>, vector<8x6xf32>, vector<8x6xf32> -> vector<64x6xf32>
    %cst_58 = arith.constant dense<0xFF800000> : vector<64xf32>
    %101 = vector.multi_reduction <maximumf>, %100, %cst_58 [1] : vector<64x6xf32> to vector<64xf32>
    %102 = vector.shape_cast %101 : vector<64xf32> to vector<64x1xf32>
    %103 = vector.broadcast %102 : vector<64x1xf32> to vector<64x6xf32>
    %104 = arith.subf %100, %103 : vector<64x6xf32>
    %105 = math.exp %104 : vector<64x6xf32>
    %cst_59 = arith.constant dense<0.000000e+00> : vector<64xf32>
    %106 = vector.multi_reduction <add>, %105, %cst_59 [1] : vector<64x6xf32> to vector<64xf32>
    %107 = vector.shape_cast %106 : vector<64xf32> to vector<64x1xf32>
    %108 = tpu.reciprocal %107 {approx = true} : vector<64x1xf32> -> vector<64x1xf32>
    %109 = vector.broadcast %108 : vector<64x1xf32> to vector<64x6xf32>
    %110 = arith.mulf %105, %109 : vector<64x6xf32>
    %111 = arith.mulf %110, %59 : vector<64x6xf32>
    %cst_60 = arith.constant dense<0.000000e+00> : vector<64xf32>
    %112 = vector.multi_reduction <add>, %111, %cst_60 [1] : vector<64x6xf32> to vector<64xf32>
    %113 = vector.shape_cast %112 : vector<64xf32> to vector<64x1xf32>
    %cst_61 = arith.constant dense<0.000000e+00> : vector<8x1xf32>
    %114 = tpu.matmul %5, %113, %cst_61 {dimension_numbers = #tpu.dot_dimension_numbers<[1], [0], [0], [1], [0, 0, 1, 1], [], []>} : vector<8x64xf32>, vector<64x1xf32>, vector<8x1xf32> -> vector<8x1xf32>
    %115 = vector.broadcast %40 : vector<1x1xf32> to vector<8x1xf32>
    %116 = arith.addf %114, %115 : vector<8x1xf32>
    %117 = vector.broadcast %6 : vector<1x64xf32> to vector<8x64xf32>
    %118 = vector.broadcast %116 : vector<8x1xf32> to vector<8x64xf32>
    %119 = arith.mulf %117, %118 : vector<8x64xf32>
    %cst_62 = arith.constant dense<0.000000e+00> : vector<8x64xf32>
    %120 = tpu.matmul %119, %22, %cst_62 {dimension_numbers = #tpu.dot_dimension_numbers<[1], [0], [0], [1], [0, 0, 1, 1], [], []>} : vector<8x64xf32>, vector<64x64xf32>, vector<8x64xf32> -> vector<8x64xf32>
    %121 = vector.broadcast %24 : vector<1x64xf32> to vector<8x64xf32>
    %122 = arith.addf %120, %121 : vector<8x64xf32>
    %cst_63 = arith.constant 0.000000e+00 : f32
    %123 = vector.broadcast %cst_63 : f32 to vector<8x64xf32>
    %124 = arith.cmpf oge, %122, %123 : vector<8x64xf32>
    %cst_64 = arith.constant 2.000000e-01 : f32
    %125 = vector.broadcast %cst_64 : f32 to vector<8x64xf32>
    %126 = arith.mulf %125, %122 : vector<8x64xf32>
    %127 = arith.select %124, %122, %126 : vector<8x64xi1>, vector<8x64xf32>
    %cst_65 = arith.constant dense<0.000000e+00> : vector<8x64xf32>
    %128 = tpu.matmul %127, %25, %cst_65 {dimension_numbers = #tpu.dot_dimension_numbers<[1], [0], [0], [1], [0, 0, 1, 1], [], []>} : vector<8x64xf32>, vector<64x64xf32>, vector<8x64xf32> -> vector<8x64xf32>
    %129 = vector.broadcast %27 : vector<1x64xf32> to vector<8x64xf32>
    %130 = arith.addf %128, %129 : vector<8x64xf32>
    %cst_66 = arith.constant dense<0.000000e+00> : vector<8x64xf32>
    %131 = tpu.matmul %7, %28, %cst_66 {dimension_numbers = #tpu.dot_dimension_numbers<[1], [0], [0], [1], [0, 0, 1, 1], [], []>} : vector<8x128xf32>, vector<128x64xf32>, vector<8x64xf32> -> vector<8x64xf32>
    %132 = vector.broadcast %30 : vector<1x64xf32> to vector<8x64xf32>
    %133 = arith.addf %131, %132 : vector<8x64xf32>
    %cst_67 = arith.constant 0.000000e+00 : f32
    %134 = vector.broadcast %cst_67 : f32 to vector<8x64xf32>
    %135 = arith.cmpf oge, %133, %134 : vector<8x64xf32>
    %cst_68 = arith.constant 2.000000e-01 : f32
    %136 = vector.broadcast %cst_68 : f32 to vector<8x64xf32>
    %137 = arith.mulf %136, %133 : vector<8x64xf32>
    %138 = arith.select %135, %133, %137 : vector<8x64xi1>, vector<8x64xf32>
    %cst_69 = arith.constant dense<0.000000e+00> : vector<8x64xf32>
    %139 = tpu.matmul %138, %31, %cst_69 {dimension_numbers = #tpu.dot_dimension_numbers<[1], [0], [0], [1], [0, 0, 1, 1], [], []>} : vector<8x64xf32>, vector<64x64xf32>, vector<8x64xf32> -> vector<8x64xf32>
    %140 = vector.broadcast %33 : vector<1x64xf32> to vector<8x64xf32>
    %141 = arith.addf %139, %140 : vector<8x64xf32>
    %142 = arith.addf %130, %51 : vector<8x64xf32>
    %cst_70 = arith.constant dense<0.000000e+00> : vector<8x64xf32>
    %143 = tpu.matmul %142, %34, %cst_70 {dimension_numbers = #tpu.dot_dimension_numbers<[1], [0], [0], [1], [0, 0, 1, 1], [], []>} : vector<8x64xf32>, vector<64x64xf32>, vector<8x64xf32> -> vector<8x64xf32>
    %144 = vector.broadcast %36 : vector<1x64xf32> to vector<8x64xf32>
    %145 = arith.addf %143, %144 : vector<8x64xf32>
    %cst_71 = arith.constant 0.000000e+00 : f32
    %146 = vector.broadcast %cst_71 : f32 to vector<8x64xf32>
    %147 = arith.cmpf oge, %145, %146 : vector<8x64xf32>
    %cst_72 = arith.constant 2.000000e-01 : f32
    %148 = vector.broadcast %cst_72 : f32 to vector<8x64xf32>
    %149 = arith.mulf %148, %145 : vector<8x64xf32>
    %150 = arith.select %147, %145, %149 : vector<8x64xi1>, vector<8x64xf32>
    %cst_73 = arith.constant dense<0.000000e+00> : vector<8x128xf32>
    %151 = tpu.matmul %150, %37, %cst_73 {dimension_numbers = #tpu.dot_dimension_numbers<[1], [0], [0], [1], [0, 0, 1, 1], [], []>} : vector<8x64xf32>, vector<64x128xf32>, vector<8x128xf32> -> vector<8x128xf32>
    %152 = vector.broadcast %38 : vector<1x128xf32> to vector<8x128xf32>
    %153 = arith.addf %151, %152 : vector<8x128xf32>
    %c0_74 = arith.constant 0 : index
    %c0_75 = arith.constant 0 : index
    %154 = vector.load %arg4[%c0_74, %c0_75] : memref<8x128xf32, #tpu.memory_space<vmem>>, vector<8x128xf32>
    tpu.vector_store %arg4[%c0_74, %c0_75], %153 {strides = array<i32>} : memref<8x128xf32, #tpu.memory_space<vmem>>, vector<8x128xf32>,
    %155 = math.absf %7 : vector<8x128xf32>
    %156 = vector.broadcast %8 : vector<1x128xf32> to vector<8x128xf32>
    %157 = arith.mulf %155, %156 : vector<8x128xf32>
    %cst_76 = arith.constant dense<0.000000e+00> : vector<8xf32>
    %158 = vector.multi_reduction <add>, %157, %cst_76 [1] : vector<8x128xf32> to vector<8xf32>
    %159 = vector.shape_cast %158 : vector<8xf32> to vector<8x1xf32>
    %cst_77 = arith.constant 1.000000e-01 : f32
    %160 = vector.broadcast %cst_77 : f32 to vector<8x1xf32>
    %161 = arith.mulf %159, %160 : vector<8x1xf32>
    %162 = math.absf %153 : vector<8x128xf32>
    %163 = vector.broadcast %8 : vector<1x128xf32> to vector<8x128xf32>
    %164 = arith.mulf %162, %163 : vector<8x128xf32>
    %cst_78 = arith.constant dense<0.000000e+00> : vector<8xf32>
    %165 = vector.multi_reduction <add>, %164, %cst_78 [1] : vector<8x128xf32> to vector<8xf32>
    %166 = vector.shape_cast %165 : vector<8xf32> to vector<8x1xf32>
    %cst_79 = arith.constant 1.000000e-01 : f32
    %167 = vector.broadcast %cst_79 : f32 to vector<8x1xf32>
    %168 = arith.mulf %166, %167 : vector<8x1xf32>
    %169 = arith.subf %168, %161 : vector<8x1xf32>
    %170 = arith.mulf %169, %169 : vector<8x1xf32>
    %cst_80 = arith.constant dense<0.000000e+00> : vector<8xf32>
    %171 = vector.multi_reduction <add>, %170, %cst_80 [1] : vector<8x1xf32> to vector<8xf32>
    %172 = vector.shape_cast %171 : vector<8xf32> to vector<8x1xf32>
    %cst_81 = arith.constant dense<0.000000e+00> : vector<1xf32>
    %173 = vector.multi_reduction <add>, %172, %cst_81 [0] : vector<8x1xf32> to vector<1xf32>
    %174 = vector.shape_cast %173 : vector<1xf32> to vector<1x1xf32>
    %cst_82 = arith.constant 1.250000e-01 : f32
    %175 = vector.broadcast %cst_82 : f32 to vector<1x1xf32>
    %176 = arith.mulf %174, %175 : vector<1x1xf32>
    %177 = arith.subf %153, %7 : vector<8x128xf32>
    %178 = arith.mulf %177, %177 : vector<8x128xf32>
    %cst_83 = arith.constant dense<0.000000e+00> : vector<8xf32>
    %179 = vector.multi_reduction <add>, %178, %cst_83 [1] : vector<8x128xf32> to vector<8xf32>
    %180 = vector.shape_cast %179 : vector<8xf32> to vector<8x1xf32>
    %cst_84 = arith.constant dense<0.000000e+00> : vector<1xf32>
    %181 = vector.multi_reduction <add>, %180, %cst_84 [0] : vector<8x1xf32> to vector<1xf32>
    %182 = vector.shape_cast %181 : vector<1xf32> to vector<1x1xf32>
    %cst_85 = arith.constant 9.765625E-4 : f32
    %183 = vector.broadcast %cst_85 : f32 to vector<1x1xf32>
    %184 = arith.mulf %182, %183 : vector<1x1xf32>
    %185 = arith.mulf %130, %141 : vector<8x64xf32>
    %cst_86 = arith.constant dense<0.000000e+00> : vector<8xf32>
    %186 = vector.multi_reduction <add>, %185, %cst_86 [1] : vector<8x64xf32> to vector<8xf32>
    %187 = vector.shape_cast %186 : vector<8xf32> to vector<8x1xf32>
    %cst_87 = arith.constant dense<0.000000e+00> : vector<1xf32>
    %188 = vector.multi_reduction <add>, %187, %cst_87 [0] : vector<8x1xf32> to vector<1xf32>
    %189 = vector.shape_cast %188 : vector<1xf32> to vector<1x1xf32>
    %190 = arith.mulf %130, %130 : vector<8x64xf32>
    %cst_88 = arith.constant dense<0.000000e+00> : vector<8xf32>
    %191 = vector.multi_reduction <add>, %190, %cst_88 [1] : vector<8x64xf32> to vector<8xf32>
    %192 = vector.shape_cast %191 : vector<8xf32> to vector<8x1xf32>
    %cst_89 = arith.constant dense<0.000000e+00> : vector<1xf32>
    %193 = vector.multi_reduction <add>, %192, %cst_89 [0] : vector<8x1xf32> to vector<1xf32>
    %194 = vector.shape_cast %193 : vector<1xf32> to vector<1x1xf32>
    %195 = arith.mulf %141, %141 : vector<8x64xf32>
    %cst_90 = arith.constant dense<0.000000e+00> : vector<8xf32>
    %196 = vector.multi_reduction <add>, %195, %cst_90 [1] : vector<8x64xf32> to vector<8xf32>
    %197 = vector.shape_cast %196 : vector<8xf32> to vector<8x1xf32>
    %cst_91 = arith.constant dense<0.000000e+00> : vector<1xf32>
    %198 = vector.multi_reduction <add>, %197, %cst_91 [0] : vector<8x1xf32> to vector<1xf32>
    %199 = vector.shape_cast %198 : vector<1xf32> to vector<1x1xf32>
    %cst_92 = arith.constant 1.000000e-16 : f32
    %200 = vector.broadcast %cst_92 : f32 to vector<1x1xf32>
    %201 = arith.maximumf %194, %200 : vector<1x1xf32>
    %202 = math.rsqrt %201 : vector<1x1xf32>
    %203 = arith.mulf %189, %202 : vector<1x1xf32>
    %cst_93 = arith.constant 1.000000e-16 : f32
    %204 = vector.broadcast %cst_93 : f32 to vector<1x1xf32>
    %205 = arith.maximumf %199, %204 : vector<1x1xf32>
    %206 = math.rsqrt %205 : vector<1x1xf32>
    %207 = arith.mulf %203, %206 : vector<1x1xf32>
    %cst_94 = arith.constant 1.000000e+00 : f32
    %208 = vector.broadcast %cst_94 : f32 to vector<1x1xf32>
    %209 = arith.subf %208, %207 : vector<1x1xf32>
    %cst_95 = arith.constant 1.000000e-01 : f32
    %210 = vector.broadcast %cst_95 : f32 to vector<1x1xf32>
    %211 = arith.mulf %210, %209 : vector<1x1xf32>
    %212 = arith.addf %184, %211 : vector<1x1xf32>
    %cst_96 = arith.constant 1.000000e-01 : f32
    %213 = vector.broadcast %cst_96 : f32 to vector<1x1xf32>
    %214 = arith.mulf %213, %176 : vector<1x1xf32>
    %215 = arith.addf %212, %214 : vector<1x1xf32>
    %216 = tpu.iota {dimensions = array<i32: 1>} : vector<1x128xi32>
    %c0_i32 = arith.constant 0 : i32
    %217 = vector.broadcast %c0_i32 : i32 to vector<1x128xi32>
    %218 = arith.cmpi eq, %216, %217 : vector<1x128xi32>
    %cst_97 = arith.constant 0.000000e+00 : f32
    %219 = vector.shape_cast %184 : vector<1x1xf32> to vector<1x1xf32>
    %220 = vector.broadcast %219 : vector<1x1xf32> to vector<1x128xf32>
    %221 = vector.broadcast %cst_97 : f32 to vector<1x128xf32>
    %222 = arith.select %218, %220, %221 : vector<1x128xi1>, vector<1x128xf32>
    %c1_i32 = arith.constant 1 : i32
    %223 = vector.broadcast %c1_i32 : i32 to vector<1x128xi32>
    %224 = arith.cmpi eq, %216, %223 : vector<1x128xi32>
    %cst_98 = arith.constant 0.000000e+00 : f32
    %225 = vector.shape_cast %209 : vector<1x1xf32> to vector<1x1xf32>
    %226 = vector.broadcast %225 : vector<1x1xf32> to vector<1x128xf32>
    %227 = vector.broadcast %cst_98 : f32 to vector<1x128xf32>
    %228 = arith.select %224, %226, %227 : vector<1x128xi1>, vector<1x128xf32>
    %229 = arith.addf %222, %228 : vector<1x128xf32>
    %c2_i32 = arith.constant 2 : i32
    %230 = vector.broadcast %c2_i32 : i32 to vector<1x128xi32>
    %231 = arith.cmpi eq, %216, %230 : vector<1x128xi32>
    %cst_99 = arith.constant 0.000000e+00 : f32
    %232 = vector.shape_cast %176 : vector<1x1xf32> to vector<1x1xf32>
    %233 = vector.broadcast %232 : vector<1x1xf32> to vector<1x128xf32>
    %234 = vector.broadcast %cst_99 : f32 to vector<1x128xf32>
    %235 = arith.select %231, %233, %234 : vector<1x128xi1>, vector<1x128xf32>
    %236 = arith.addf %229, %235 : vector<1x128xf32>
    %c3_i32 = arith.constant 3 : i32
    %237 = vector.broadcast %c3_i32 : i32 to vector<1x128xi32>
    %238 = arith.cmpi eq, %216, %237 : vector<1x128xi32>
    %cst_100 = arith.constant 0.000000e+00 : f32
    %239 = vector.shape_cast %215 : vector<1x1xf32> to vector<1x1xf32>
    %240 = vector.broadcast %239 : vector<1x1xf32> to vector<1x128xf32>
    %241 = vector.broadcast %cst_100 : f32 to vector<1x128xf32>
    %242 = arith.select %238, %240, %241 : vector<1x128xi1>, vector<1x128xf32>
    %243 = arith.addf %236, %242 : vector<1x128xf32>
    %c0_101 = arith.constant 0 : index
    %c0_102 = arith.constant 0 : index
    %244 = vector.load %arg5[%c0_101, %c0_102] : memref<1x128xf32, #tpu.memory_space<vmem>>, vector<1x128xf32>
    tpu.vector_store %arg5[%c0_101, %c0_102], %243 {strides = array<i32>} : memref<1x128xf32, #tpu.memory_space<vmem>>, vector<1x128xf32>,
    return
  }
}

</mosaic_0001>

<llo_original>
// kernel: tpu_custom_call.1
$region0: #{tpu_custom_call.1}
  #allocation0 [shape = 'u32[]', space=smem, size = 0x4, offset = 0x4, fixed_abs, tag = 'smem constant byte address 0x4 - core index']
  #allocation1 [shape = 'u32[144,128]{1,0:T(1,128)}', space=vmem, size = 0x12000, scoped, tag = 'internal scratch']
  %s0 = inlined_call_operand.vmem [shape: f32[56,64], index: 0, kind: input, shape index: {}]
  %s1 = inlined_call_operand.vmem [shape: f32[16,128], index: 1, kind: input, shape index: {}]
  %s2 = inlined_call_operand.vmem [shape: f32[704,64], index: 2, kind: input, shape index: {}]
  %s3 = inlined_call_operand.vmem [shape: f32[80,128], index: 3, kind: input, shape index: {}]
  %s4 = inlined_call_operand.hbm [shape: f32[8,128], index: 4, kind: output, shape index: {0}]
  %s5 = inlined_call_operand.hbm [shape: f32[1,128], index: 5, kind: output, shape index: {1}]
  %6 = xla_tuple %s4, %s5
  %s7 = sld [smem:[#allocation0]]
  $region34: #{tpu_custom_call.1} parent=0
    _
  %s9 = ssub.s32 1, %s7
  %s10 = scalar_select 0, %s9, %s7
  $region1: #{tpu_custom_call.1} parent=0
    #allocation2 [shape = 'u8[4096]{0}', space=vmem, size = 0x1000, scoped, tag = 'output window, operand 0, single buffered']
    #allocation3 [shape = 's32[1]{0}', space=sflag, size = 0x4, scoped, tag = 'scoped memory for tpu_custom_call.1']
    #allocation4 [shape = 'u8[512]{0}', space=vmem, size = 0x400, scoped, tag = 'output window, operand 1, single buffered']
    #allocation5 [shape = 's32[1]{0}', space=sflag, size = 0x4, scoped, tag = 'scoped memory for tpu_custom_call.1']
    %11 = vsyncpa [#allocation3], 0
    %12 = vsyncpa [#allocation5], 0
    // Predicated region
    $region2: #{tpu_custom_call.1} parent=1 // pred_check
      _
    $region3: #{tpu_custom_call.1} parent=1 // pred_check_branch
      %14 = sbr.rel (0) target = $region5
    $region4: #{tpu_custom_call.1} parent=1 // pred_region
      _
    $region5: #{tpu_custom_call.1} parent=1 // pred_fallthru
      _
    // Predicated region
    $region6: #{tpu_custom_call.1} parent=1 // pred_check
      _
    $region7: #{tpu_custom_call.1} parent=1 // pred_check_branch
      %16 = sbr.rel (0) target = $region9
    $region8: #{tpu_custom_call.1} parent=1 // pred_region
      _
    $region9: #{tpu_custom_call.1} parent=1 // pred_fallthru
      _
    // Predicated region
    $region10: #{tpu_custom_call.1} parent=1 // pred_check
      _
    $region11: #{tpu_custom_call.1} parent=1 // pred_check_branch
      %18 = sbr.rel (0) target = $region13
    $region12: #{tpu_custom_call.1} parent=1 // pred_region
      _
    $region13: #{tpu_custom_call.1} parent=1 // pred_fallthru
      _
    // Predicated region
    $region14: #{tpu_custom_call.1} parent=1 // pred_check
      _
    $region15: #{tpu_custom_call.1} parent=1 // pred_check_branch
      %20 = sbr.rel (0) target = $region17
    $region16: #{tpu_custom_call.1} parent=1 // pred_region
      _
    $region17: #{tpu_custom_call.1} parent=1 // pred_fallthru
      _
    %v21 = vld [vmem:[%s0] sm:$0xff]
    %v22 = vld [vmem:[%s0 + $0x8] sm:$0xff]
    %v23 = vld [vmem:[%s0 + $0x10] sm:$0xff]
    %v24 = vld [vmem:[%s0 + $0x18] sm:$0x3f]
    %v25 = vld [vmem:[%s0 + $0x20] sm:$0xff]
    %v26 = vld [vmem:[%s0 + $0x28] sm:$0xff]
    %v27 = vld [vmem:[%s0 + $0x30] sm:$0x1]
    %v28 = vld [vmem:[%s1] sm:$0xff]
    %v29 = vld [vmem:[%s1 + $0x8] sm:$0x1]
    %v30 = vld [vmem:[%s2] sm:$0xff]
    %v31 = vld [vmem:[%s2 + $0x8] sm:$0xff]
    %v32 = vld [vmem:[%s2 + $0x10] sm:$0xff]
    %v33 = vld [vmem:[%s2 + $0x18] sm:$0xff]
    %v34 = vld [vmem:[%s2 + $0x20] sm:$0xff]
    %v35 = vld [vmem:[%s2 + $0x28] sm:$0xff]
    %v36 = vld [vmem:[%s2 + $0x30] sm:$0xff]
    %v37 = vld [vmem:[%s2 + $0x38] sm:$0xff]
    %v38 = vld [vmem:[%s3] sm:$0x1]
    %v39 = vld [vmem:[%s2 + $0x40] sm:$0xff]
    %v40 = vld [vmem:[%s2 + $0x48] sm:$0xff]
    %v41 = vld [vmem:[%s2 + $0x50] sm:$0xff]
    %v42 = vld [vmem:[%s2 + $0x58] sm:$0xff]
    %v43 = vld [vmem:[%s2 + $0x60] sm:$0xff]
    %v44 = vld [vmem:[%s2 + $0x68] sm:$0xff]
    %v45 = vld [vmem:[%s2 + $0x70] sm:$0xff]
    %v46 = vld [vmem:[%s2 + $0x78] sm:$0xff]
    %v47 = vld [vmem:[%s3 + $0x1] sm:$0x1]
    %v48 = vld [vmem:[%s2 + $0x80] sm:$0xff]
    %v49 = vld [vmem:[%s2 + $0x88] sm:$0xff]
    %v50 = vld [vmem:[%s2 + $0x90] sm:$0xff]
    %v51 = vld [vmem:[%s2 + $0x98] sm:$0xff]
    %v52 = vld [vmem:[%s2 + $0xa0] sm:$0xff]
    %v53 = vld [vmem:[%s2 + $0xa8] sm:$0xff]
    %v54 = vld [vmem:[%s2 + $0xb0] sm:$0xff]
    %v55 = vld [vmem:[%s2 + $0xb8] sm:$0xff]
    %v56 = vld [vmem:[%s3 + $0x2] sm:$0x1]
    %v57 = vld [vmem:[%s2 + $0xc0] sm:$0xff]
    %v58 = vld [vmem:[%s2 + $0xc8] sm:$0xff]
    %v59 = vld [vmem:[%s2 + $0xd0] sm:$0xff]
    %v60 = vld [vmem:[%s2 + $0xd8] sm:$0xff]
    %v61 = vld [vmem:[%s2 + $0xe0] sm:$0xff]
    %v62 = vld [vmem:[%s2 + $0xe8] sm:$0xff]
    %v63 = vld [vmem:[%s2 + $0xf0] sm:$0xff]
    %v64 = vld [vmem:[%s2 + $0xf8] sm:$0xff]
    %v65 = vld [vmem:[%s3 + $0x3] sm:$0x1]
    %v66 = vld [vmem:[%s2 + $0x100] sm:$0xff]
    %v67 = vld [vmem:[%s2 + $0x108] sm:$0xff]
    %v68 = vld [vmem:[%s2 + $0x110] sm:$0xff]
    %v69 = vld [vmem:[%s2 + $0x118] sm:$0xff]
    %v70 = vld [vmem:[%s2 + $0x120] sm:$0xff]
    %v71 = vld [vmem:[%s2 + $0x128] sm:$0xff]
    %v72 = vld [vmem:[%s2 + $0x130] sm:$0xff]
    %v73 = vld [vmem:[%s2 + $0x138] sm:$0xff]
    %v74 = vld [vmem:[%s2 + $0x140] sm:$0xff]
    %v75 = vld [vmem:[%s2 + $0x148] sm:$0xff]
    %v76 = vld [vmem:[%s2 + $0x150] sm:$0xff]
    %v77 = vld [vmem:[%s2 + $0x158] sm:$0xff]
    %v78 = vld [vmem:[%s2 + $0x160] sm:$0xff]
    %v79 = vld [vmem:[%s2 + $0x168] sm:$0xff]
    %v80 = vld [vmem:[%s2 + $0x170] sm:$0xff]
    %v81 = vld [vmem:[%s2 + $0x178] sm:$0xff]
    %v82 = vld [vmem:[%s3 + $0x4] sm:$0x1]
    %v83 = vld [vmem:[%s2 + $0x180] sm:$0xff]
    %v84 = vld [vmem:[%s2 + $0x188] sm:$0xff]
    %v85 = vld [vmem:[%s2 + $0x190] sm:$0xff]
    %v86 = vld [vmem:[%s2 + $0x198] sm:$0xff]
    %v87 = vld [vmem:[%s2 + $0x1a0] sm:$0xff]
    %v88 = vld [vmem:[%s2 + $0x1a8] sm:$0xff]
    %v89 = vld [vmem:[%s2 + $0x1b0] sm:$0xff]
    %v90 = vld [vmem:[%s2 + $0x1b8] sm:$0xff]
    %v91 = vld [vmem:[%s3 + $0x5] sm:$0x1]
    %v92 = vld [vmem:[%s2 + $0x1c0] sm:$0xff]
    %v93 = vld [vmem:[%s2 + $0x1c8] sm:$0xff]
    %v94 = vld [vmem:[%s2 + $0x1d0] sm:$0xff]
    %v95 = vld [vmem:[%s2 + $0x1d8] sm:$0xff]
    %v96 = vld [vmem:[%s2 + $0x1e0] sm:$0xff]
    %v97 = vld [vmem:[%s2 + $0x1e8] sm:$0xff]
    %v98 = vld [vmem:[%s2 + $0x1f0] sm:$0xff]
    %v99 = vld [vmem:[%s2 + $0x1f8] sm:$0xff]
    %v100 = vld [vmem:[%s2 + $0x200] sm:$0xff]
    %v101 = vld [vmem:[%s2 + $0x208] sm:$0xff]
    %v102 = vld [vmem:[%s2 + $0x210] sm:$0xff]
    %v103 = vld [vmem:[%s2 + $0x218] sm:$0xff]
    %v104 = vld [vmem:[%s2 + $0x220] sm:$0xff]
    %v105 = vld [vmem:[%s2 + $0x228] sm:$0xff]
    %v106 = vld [vmem:[%s2 + $0x230] sm:$0xff]
    %v107 = vld [vmem:[%s2 + $0x238] sm:$0xff]
    %v108 = vld [vmem:[%s3 + $0x6] sm:$0x1]
    %v109 = vld [vmem:[%s2 + $0x240] sm:$0xff]
    %v110 = vld [vmem:[%s2 + $0x248] sm:$0xff]
    %v111 = vld [vmem:[%s2 + $0x250] sm:$0xff]
    %v112 = vld [vmem:[%s2 + $0x258] sm:$0xff]
    %v113 = vld [vmem:[%s2 + $0x260] sm:$0xff]
    %v114 = vld [vmem:[%s2 + $0x268] sm:$0xff]
    %v115 = vld [vmem:[%s2 + $0x270] sm:$0xff]
    %v116 = vld [vmem:[%s2 + $0x278] sm:$0xff]
    %v117 = vld [vmem:[%s3 + $0x7] sm:$0x1]
    %v118 = vld [vmem:[%s2 + $0x280] sm:$0xff]
    %v119 = vld [vmem:[%s2 + $0x288] sm:$0xff]
    %v120 = vld [vmem:[%s2 + $0x290] sm:$0xff]
    %v121 = vld [vmem:[%s2 + $0x298] sm:$0xff]
    %v122 = vld [vmem:[%s2 + $0x2a0] sm:$0xff]
    %v123 = vld [vmem:[%s2 + $0x2a8] sm:$0xff]
    %v124 = vld [vmem:[%s2 + $0x2b0] sm:$0xff]
    %v125 = vld [vmem:[%s2 + $0x2b8] sm:$0xff]
    %v126 = vld [vmem:[%s3 + $0x8] sm:$0x1]
    %v127 = vld [vmem:[%s3 + $0x10] sm:$0xff]
    %v128 = vld [vmem:[%s3 + $0x18] sm:$0xff]
    %v129 = vld [vmem:[%s3 + $0x20] sm:$0xff]
    %v130 = vld [vmem:[%s3 + $0x28] sm:$0xff]
    %v131 = vld [vmem:[%s3 + $0x30] sm:$0xff]
    %v132 = vld [vmem:[%s3 + $0x38] sm:$0xff]
    %v133 = vld [vmem:[%s3 + $0x40] sm:$0xff]
    %v134 = vld [vmem:[%s3 + $0x48] sm:$0xff]
    %v135 = vld [vmem:[%s3 + $0x9] sm:$0x1]
    %v136 = vld [vmem:[%s3 + $0xa] sm:$0x1]
    %v137 = vlaneseq
    %v138 = vshrl.u32 %v137, 7
    %v139 = vsub.s32 0, %v138
    %v140 = vrot.slane %v38, %v139
    %vm141 = vcmask 523264
    %v143 = vsel %vm141, %v21, 0
    %145 = vmatprep.subr.mxu0 0.0
    %146 = vmatpush1.msra.mxu0 %v30
    %147 = vmatprep.subr.mxu0 0.0
    %148 = vmatpush1.msra.mxu0 %v31
    %149 = vmatprep.subr.mxu0 0.0
    %150 = vmatpush1.msra.mxu0 %v32
    %151 = vmatprep.subr.mxu0 0.0
    %152 = vmatpush1.msra.mxu0 %v33
    %153 = vmatprep.subr.mxu0 0.0
    %154 = vmatpush1.msra.mxu0 %v34
    %155 = vmatprep.subr.mxu0 0.0
    %156 = vmatpush1.msra.mxu0 %v35
    %157 = vmatprep.subr.mxu0 0.0
    %158 = vmatpush1.msra.mxu0 %v36
    %159 = vmatprep.subr.mxu0 0.0
    %160 = vmatpush1.msra.mxu0 %v37
    %161 = vmatprep.subr.mxu0 0.0
    %162 = vmatpush1.msra.mxu0 0.0
    %163 = vmatprep.subr.mxu0 0.0
    %164 = vmatpush1.msra.mxu0 0.0
    %165 = vmatprep.subr.mxu0 0.0
    %166 = vmatpush1.msra.mxu0 0.0
    %167 = vmatprep.subr.mxu0 0.0
    %168 = vmatpush1.msra.mxu0 0.0
    %169 = vmatprep.subr.mxu0 0.0
    %170 = vmatpush1.msra.mxu0 0.0
    %171 = vmatprep.subr.mxu0 0.0
    %172 = vmatpush1.msra.mxu0 0.0
    %173 = vmatprep.subr.mxu0 0.0
    %174 = vmatpush1.msra.mxu0 0.0
    %175 = vmatprep.subr.mxu0 0.0
    %176 = vmatpush1.msra.mxu0 0.0
    %177 = vmatprep.subr.mxu0 0.0
    %178 = vmatpush1.msra.mxu0 0.0
    %179 = vmatprep.subr.mxu0 0.0
    %180 = vmatpush1.msra.mxu0 0.0
    %181 = vmatprep.subr.mxu0 0.0
    %182 = vmatpush1.msra.mxu0 0.0
    %183 = vmatprep.subr.mxu0 0.0
    %184 = vmatpush1.msra.mxu0 0.0
    %185 = vmatprep.subr.mxu0 0.0
    %186 = vmatpush1.msra.mxu0 0.0
    %187 = vmatprep.subr.mxu0 0.0
    %188 = vmatpush1.msra.mxu0 0.0
    %189 = vmatprep.subr.mxu0 0.0
    %190 = vmatpush1.msra.mxu0 0.0
    %191 = vmatprep.subr.mxu0 0.0
    %192 = vmatpush1.msra.mxu0 0.0
    %193 = vmatprep.subr.mxu0 0.0
    %194 = vmatpush1.msra.mxu0 0.0
    %195 = vmatprep.subr.mxu0 0.0
    %196 = vmatpush1.msra.mxu0 0.0
    %197 = vmatprep.subr.mxu0 0.0
    %198 = vmatpush1.msra.mxu0 0.0
    %199 = vmatprep.subr.mxu0 0.0
    %200 = vmatpush1.msra.mxu0 0.0
    %201 = vmatprep.subr.mxu0 0.0
    %202 = vmatpush1.msra.mxu0 0.0
    %203 = vmatprep.subr.mxu0 0.0
    %204 = vmatpush1.msra.mxu0 0.0
    %205 = vmatprep.subr.mxu0 0.0
    %206 = vmatpush1.msra.mxu0 0.0
    %207 = vmatprep.subr.mxu0 0.0
    %208 = vmatpush1.msra.mxu0 0.0
    %209 = vmatprep.mubr.f32.mxu0 0.0
    %210 = vmatmul.mubr.f32.gmra.mrb[0].mxu0 %v143
    %v211 = vpop.f32.mrb[0].mxu0
    %v212 = vadd.f32 %v140, %v211
    %v213 = vpop.f32.mrb[0].mxu0
    %214 = vdwg.mxu0
    %vm215 = vcmp.ge.f32.partialorder %v212, 0.0
    %v216 = vmul.f32 %v212, 0.2
    %v217 = vsel %vm215, %v212, %v216
    %v218 = vlaneseq
    %v219 = vshrl.u32 %v218, 7
    %v220 = vsub.s32 0, %v219
    %v221 = vrot.slane %v47, %v220
    %v223 = vsel %vm141, %v217, 0
    %225 = vmatprep.subr.mxu0 0.0
    %226 = vmatpush1.msra.mxu0 %v39
    %227 = vmatprep.subr.mxu0 0.0
    %228 = vmatpush1.msra.mxu0 %v40
    %229 = vmatprep.subr.mxu0 0.0
    %230 = vmatpush1.msra.mxu0 %v41
    %231 = vmatprep.subr.mxu0 0.0
    %232 = vmatpush1.msra.mxu0 %v42
    %233 = vmatprep.subr.mxu0 0.0
    %234 = vmatpush1.msra.mxu0 %v43
    %235 = vmatprep.subr.mxu0 0.0
    %236 = vmatpush1.msra.mxu0 %v44
    %237 = vmatprep.subr.mxu0 0.0
    %238 = vmatpush1.msra.mxu0 %v45
    %239 = vmatprep.subr.mxu0 0.0
    %240 = vmatpush1.msra.mxu0 %v46
    %241 = vmatprep.subr.mxu0 0.0
    %242 = vmatpush1.msra.mxu0 0.0
    %243 = vmatprep.subr.mxu0 0.0
    %244 = vmatpush1.msra.mxu0 0.0
    %245 = vmatprep.subr.mxu0 0.0
    %246 = vmatpush1.msra.mxu0 0.0
    %247 = vmatprep.subr.mxu0 0.0
    %248 = vmatpush1.msra.mxu0 0.0
    %249 = vmatprep.subr.mxu0 0.0
    %250 = vmatpush1.msra.mxu0 0.0
    %251 = vmatprep.subr.mxu0 0.0
    %252 = vmatpush1.msra.mxu0 0.0
    %253 = vmatprep.subr.mxu0 0.0
    %254 = vmatpush1.msra.mxu0 0.0
    %255 = vmatprep.subr.mxu0 0.0
    %256 = vmatpush1.msra.mxu0 0.0
    %257 = vmatprep.subr.mxu0 0.0
    %258 = vmatpush1.msra.mxu0 0.0
    %259 = vmatprep.subr.mxu0 0.0
    %260 = vmatpush1.msra.mxu0 0.0
    %261 = vmatprep.subr.mxu0 0.0
    %262 = vmatpush1.msra.mxu0 0.0
    %263 = vmatprep.subr.mxu0 0.0
    %264 = vmatpush1.msra.mxu0 0.0
    %265 = vmatprep.subr.mxu0 0.0
    %266 = vmatpush1.msra.mxu0 0.0
    %267 = vmatprep.subr.mxu0 0.0
    %268 = vmatpush1.msra.mxu0 0.0
    %269 = vmatprep.subr.mxu0 0.0
    %270 = vmatpush1.msra.mxu0 0.0
    %271 = vmatprep.subr.mxu0 0.0
    %272 = vmatpush1.msra.mxu0 0.0
    %273 = vmatprep.subr.mxu0 0.0
    %274 = vmatpush1.msra.mxu0 0.0
    %275 = vmatprep.subr.mxu0 0.0
    %276 = vmatpush1.msra.mxu0 0.0
    %277 = vmatprep.subr.mxu0 0.0
    %278 = vmatpush1.msra.mxu0 0.0
    %279 = vmatprep.subr.mxu0 0.0
    %280 = vmatpush1.msra.mxu0 0.0
    %281 = vmatprep.subr.mxu0 0.0
    %282 = vmatpush1.msra.mxu0 0.0
    %283 = vmatprep.subr.mxu0 0.0
    %284 = vmatpush1.msra.mxu0 0.0
    %285 = vmatprep.subr.mxu0 0.0
    %286 = vmatpush1.msra.mxu0 0.0
    %287 = vmatprep.subr.mxu0 0.0
    %288 = vmatpush1.msra.mxu0 0.0
    %289 = vmatprep.mubr.f32.mxu0 0.0
    %290 = vmatmul.mubr.f32.gmra.mrb[0].mxu0 %v223
    %v291 = vpop.f32.mrb[0].mxu0
    %v292 = vadd.f32 %v221, %v291
    %v293 = vpop.f32.mrb[0].mxu0
    %294 = vdwg.mxu0
    %vm295 = vcmask 130048
    %v297 = vsel %vm295, %v25, 0
    %299 = vmatprep.subr.mxu0 0.0
    %300 = vmatpush1.msra.mxu0 %v22
    %301 = vmatprep.subr.mxu0 0.0
    %302 = vmatpush1.msra.mxu0 %v23
    %303 = vmatprep.subr.mxu0 0.0
    %304 = vmatpush1.msra.mxu0 0.0
    %305 = vmatprep.subr.mxu0 0.0
    %306 = vmatpush1.msra.mxu0 0.0
    %307 = vmatprep.subr.mxu0 0.0
    %308 = vmatpush1.msra.mxu0 0.0
    %309 = vmatprep.subr.mxu0 0.0
    %310 = vmatpush1.msra.mxu0 0.0
    %311 = vmatprep.subr.mxu0 0.0
    %312 = vmatpush1.msra.mxu0 0.0
    %313 = vmatprep.subr.mxu0 0.0
    %314 = vmatpush1.msra.mxu0 0.0
    %315 = vmatprep.subr.mxu0 0.0
    %316 = vmatpush1.msra.mxu0 0.0
    %317 = vmatprep.subr.mxu0 0.0
    %318 = vmatpush1.msra.mxu0 0.0
    %319 = vmatprep.subr.mxu0 0.0
    %320 = vmatpush1.msra.mxu0 0.0
    %321 = vmatprep.subr.mxu0 0.0
    %322 = vmatpush1.msra.mxu0 0.0
    %323 = vmatprep.subr.mxu0 0.0
    %324 = vmatpush1.msra.mxu0 0.0
    %325 = vmatprep.subr.mxu0 0.0
    %326 = vmatpush1.msra.mxu0 0.0
    %327 = vmatprep.subr.mxu0 0.0
    %328 = vmatpush1.msra.mxu0 0.0
    %329 = vmatprep.subr.mxu0 0.0
    %330 = vmatpush1.msra.mxu0 0.0
    %331 = vmatprep.subr.mxu0 0.0
    %332 = vmatpush1.msra.mxu0 0.0
    %333 = vmatprep.subr.mxu0 0.0
    %334 = vmatpush1.msra.mxu0 0.0
    %335 = vmatprep.subr.mxu0 0.0
    %336 = vmatpush1.msra.mxu0 0.0
    %337 = vmatprep.subr.mxu0 0.0
    %338 = vmatpush1.msra.mxu0 0.0
    %339 = vmatprep.subr.mxu0 0.0
    %340 = vmatpush1.msra.mxu0 0.0
    %341 = vmatprep.subr.mxu0 0.0
    %342 = vmatpush1.msra.mxu0 0.0
    %343 = vmatprep.subr.mxu0 0.0
    %344 = vmatpush1.msra.mxu0 0.0
    %345 = vmatprep.subr.mxu0 0.0
    %346 = vmatpush1.msra.mxu0 0.0
    %347 = vmatprep.subr.mxu0 0.0
    %348 = vmatpush1.msra.mxu0 0.0
    %349 = vmatprep.subr.mxu0 0.0
    %350 = vmatpush1.msra.mxu0 0.0
    %351 = vmatprep.subr.mxu0 0.0
    %352 = vmatpush1.msra.mxu0 0.0
    %353 = vmatprep.subr.mxu0 0.0
    %354 = vmatpush1.msra.mxu0 0.0
    %355 = vmatprep.subr.mxu0 0.0
    %356 = vmatpush1.msra.mxu0 0.0
    %357 = vmatprep.subr.mxu0 0.0
    %358 = vmatpush1.msra.mxu0 0.0
    %359 = vmatprep.subr.mxu0 0.0
    %360 = vmatpush1.msra.mxu0 0.0
    %361 = vmatprep.subr.mxu0 0.0
    %362 = vmatpush1.msra.mxu0 0.0
    %363 = vmatprep.mubr.f32.mxu0 0.0
    %364 = vmatmul.mubr.f32.gmra.mrb[0].mxu0 %v297
    %v365 = vpop.f32.mrb[0].mxu0
    %v366 = vadd.f32 0.0, %v365
    %v367 = vpop.f32.mrb[0].mxu0
    %368 = vdwg.mxu0
    %v369 = vlaneseq
    %v370 = vshrl.u32 %v369, 7
    %v371 = vsub.s32 0, %v370
    %v372 = vrot.slane %v56, %v371
    %v374 = vsel %vm141, %v366, 0
    %376 = vmatprep.subr.mxu0 0.0
    %377 = vmatpush1.msra.mxu0 %v48
    %378 = vmatprep.subr.mxu0 0.0
    %379 = vmatpush1.msra.mxu0 %v49
    %380 = vmatprep.subr.mxu0 0.0
    %381 = vmatpush1.msra.mxu0 %v50
    %382 = vmatprep.subr.mxu0 0.0
    %383 = vmatpush1.msra.mxu0 %v51
    %384 = vmatprep.subr.mxu0 0.0
    %385 = vmatpush1.msra.mxu0 %v52
    %386 = vmatprep.subr.mxu0 0.0
    %387 = vmatpush1.msra.mxu0 %v53
    %388 = vmatprep.subr.mxu0 0.0
    %389 = vmatpush1.msra.mxu0 %v54
    %390 = vmatprep.subr.mxu0 0.0
    %391 = vmatpush1.msra.mxu0 %v55
    %392 = vmatprep.subr.mxu0 0.0
    %393 = vmatpush1.msra.mxu0 0.0
    %394 = vmatprep.subr.mxu0 0.0
    %395 = vmatpush1.msra.mxu0 0.0
    %396 = vmatprep.subr.mxu0 0.0
    %397 = vmatpush1.msra.mxu0 0.0
    %398 = vmatprep.subr.mxu0 0.0
    %399 = vmatpush1.msra.mxu0 0.0
    %400 = vmatprep.subr.mxu0 0.0
    %401 = vmatpush1.msra.mxu0 0.0
    %402 = vmatprep.subr.mxu0 0.0
    %403 = vmatpush1.msra.mxu0 0.0
    %404 = vmatprep.subr.mxu0 0.0
    %405 = vmatpush1.msra.mxu0 0.0
    %406 = vmatprep.subr.mxu0 0.0
    %407 = vmatpush1.msra.mxu0 0.0
    %408 = vmatprep.subr.mxu0 0.0
    %409 = vmatpush1.msra.mxu0 0.0
    %410 = vmatprep.subr.mxu0 0.0
    %411 = vmatpush1.msra.mxu0 0.0
    %412 = vmatprep.subr.mxu0 0.0
    %413 = vmatpush1.msra.mxu0 0.0
    %414 = vmatprep.subr.mxu0 0.0
    %415 = vmatpush1.msra.mxu0 0.0
    %416 = vmatprep.subr.mxu0 0.0
    %417 = vmatpush1.msra.mxu0 0.0
    %418 = vmatprep.subr.mxu0 0.0
    %419 = vmatpush1.msra.mxu0 0.0
    %420 = vmatprep.subr.mxu0 0.0
    %421 = vmatpush1.msra.mxu0 0.0
    %422 = vmatprep.subr.mxu0 0.0
    %423 = vmatpush1.msra.mxu0 0.0
    %424 = vmatprep.subr.mxu0 0.0
    %425 = vmatpush1.msra.mxu0 0.0
    %426 = vmatprep.subr.mxu0 0.0
    %427 = vmatpush1.msra.mxu0 0.0
    %428 = vmatprep.subr.mxu0 0.0
    %429 = vmatpush1.msra.mxu0 0.0
    %430 = vmatprep.subr.mxu0 0.0
    %431 = vmatpush1.msra.mxu0 0.0
    %432 = vmatprep.subr.mxu0 0.0
    %433 = vmatpush1.msra.mxu0 0.0
    %434 = vmatprep.subr.mxu0 0.0
    %435 = vmatpush1.msra.mxu0 0.0
    %436 = vmatprep.subr.mxu0 0.0
    %437 = vmatpush1.msra.mxu0 0.0
    %438 = vmatprep.subr.mxu0 0.0
    %439 = vmatpush1.msra.mxu0 0.0
    %440 = vmatprep.mubr.f32.mxu0 0.0
    %441 = vmatmul.mubr.f32.gmra.mrb[0].mxu0 %v374
    %v442 = vpop.f32.mrb[0].mxu0
    %v443 = vadd.f32 %v372, %v442
    %v444 = vpop.f32.mrb[0].mxu0
    %445 = vdwg.mxu0
    %v446 = vlaneseq
    %v447 = vshrl.u32 %v446, 7
    %v448 = vsub.s32 0, %v447
    %v449 = vrot.slane %v65, %v448
    %v451 = vsel %vm141, %v24, 0
    %453 = vmatprep.subr.mxu0 0.0
    %454 = vmatpush1.msra.mxu0 %v57
    %455 = vmatprep.subr.mxu0 0.0
    %456 = vmatpush1.msra.mxu0 %v58
    %457 = vmatprep.subr.mxu0 0.0
    %458 = vmatpush1.msra.mxu0 %v59
    %459 = vmatprep.subr.mxu0 0.0
    %460 = vmatpush1.msra.mxu0 %v60
    %461 = vmatprep.subr.mxu0 0.0
    %462 = vmatpush1.msra.mxu0 %v61
    %463 = vmatprep.subr.mxu0 0.0
    %464 = vmatpush1.msra.mxu0 %v62
    %465 = vmatprep.subr.mxu0 0.0
    %466 = vmatpush1.msra.mxu0 %v63
    %467 = vmatprep.subr.mxu0 0.0
    %468 = vmatpush1.msra.mxu0 %v64
    %469 = vmatprep.subr.mxu0 0.0
    %470 = vmatpush1.msra.mxu0 0.0
    %471 = vmatprep.subr.mxu0 0.0
    %472 = vmatpush1.msra.mxu0 0.0
    %473 = vmatprep.subr.mxu0 0.0
    %474 = vmatpush1.msra.mxu0 0.0
    %475 = vmatprep.subr.mxu0 0.0
    %476 = vmatpush1.msra.mxu0 0.0
    %477 = vmatprep.subr.mxu0 0.0
    %478 = vmatpush1.msra.mxu0 0.0
    %479 = vmatprep.subr.mxu0 0.0
    %480 = vmatpush1.msra.mxu0 0.0
    %481 = vmatprep.subr.mxu0 0.0
    %482 = vmatpush1.msra.mxu0 0.0
    %483 = vmatprep.subr.mxu0 0.0
    %484 = vmatpush1.msra.mxu0 0.0
    %485 = vmatprep.subr.mxu0 0.0
    %486 = vmatpush1.msra.mxu0 0.0
    %487 = vmatprep.subr.mxu0 0.0
    %488 = vmatpush1.msra.mxu0 0.0
    %489 = vmatprep.subr.mxu0 0.0
    %490 = vmatpush1.msra.mxu0 0.0
    %491 = vmatprep.subr.mxu0 0.0
    %492 = vmatpush1.msra.mxu0 0.0
    %493 = vmatprep.subr.mxu0 0.0
    %494 = vmatpush1.msra.mxu0 0.0
    %495 = vmatprep.subr.mxu0 0.0
    %496 = vmatpush1.msra.mxu0 0.0
    %497 = vmatprep.subr.mxu0 0.0
    %498 = vmatpush1.msra.mxu0 0.0
    %499 = vmatprep.subr.mxu0 0.0
    %500 = vmatpush1.msra.mxu0 0.0
    %501 = vmatprep.subr.mxu0 0.0
    %502 = vmatpush1.msra.mxu0 0.0
    %503 = vmatprep.subr.mxu0 0.0
    %504 = vmatpush1.msra.mxu0 0.0
    %505 = vmatprep.subr.mxu0 0.0
    %506 = vmatpush1.msra.mxu0 0.0
    %507 = vmatprep.subr.mxu0 0.0
    %508 = vmatpush1.msra.mxu0 0.0
    %509 = vmatprep.subr.mxu0 0.0
    %510 = vmatpush1.msra.mxu0 0.0
    %511 = vmatprep.subr.mxu0 0.0
    %512 = vmatpush1.msra.mxu0 0.0
    %513 = vmatprep.subr.mxu0 0.0
    %514 = vmatpush1.msra.mxu0 0.0
    %515 = vmatprep.subr.mxu0 0.0
    %516 = vmatpush1.msra.mxu0 0.0
    %517 = vmatprep.mubr.f32.mxu0 0.0
    %518 = vmatmul.mubr.f32.gmra.mrb[0].mxu0 %v451
    %v519 = vpop.f32.mrb[0].mxu0
    %v520 = vadd.f32 %v449, %v519
    %v521 = vpop.f32.mrb[0].mxu0
    %522 = vdwg.mxu0
    %v524 = vsel %vm141, %v66, 0
    %v527 = vsel %vm141, %v67, 0
    %v530 = vsel %vm141, %v68, 0
    %v533 = vsel %vm141, %v69, 0
    %v536 = vsel %vm141, %v70, 0
    %v539 = vsel %vm141, %v71, 0
    %v542 = vsel %vm141, %v72, 0
    %v545 = vsel %vm141, %v73, 0
    %547 = vmatprep.subr.mxu0 0.0
    %548 = vmatpush1.xpose.msra.mxu0 %v451
    %549 = vmatprep.subr.mxu0 0.0
    %550 = vmatpush1.xpose.msra.mxu0 0.0
    %551 = vmatprep.subr.mxu0 0.0
    %552 = vmatpush1.xpose.msra.mxu0 0.0
    %553 = vmatprep.subr.mxu0 0.0
    %554 = vmatpush1.xpose.msra.mxu0 0.0
    %555 = vmatprep.subr.mxu0 0.0
    %556 = vmatpush1.xpose.msra.mxu0 0.0
    %557 = vmatprep.subr.mxu0 0.0
    %558 = vmatpush1.xpose.msra.mxu0 0.0
    %559 = vmatprep.subr.mxu0 0.0
    %560 = vmatpush1.xpose.msra.mxu0 0.0
    %561 = vmatprep.subr.mxu0 0.0
    %562 = vmatpush1.xpose.msra.mxu0 0.0
    %563 = vmatprep.subr.mxu0 0.0
    %564 = vmatpush1.xpose.msra.mxu0 0.0
    %565 = vmatprep.subr.mxu0 0.0
    %566 = vmatpush1.xpose.msra.mxu0 0.0
    %567 = vmatprep.subr.mxu0 0.0
    %568 = vmatpush1.xpose.msra.mxu0 0.0
    %569 = vmatprep.subr.mxu0 0.0
    %570 = vmatpush1.xpose.msra.mxu0 0.0
    %571 = vmatprep.subr.mxu0 0.0
    %572 = vmatpush1.xpose.msra.mxu0 0.0
    %573 = vmatprep.subr.mxu0 0.0
    %574 = vmatpush1.xpose.msra.mxu0 0.0
    %575 = vmatprep.subr.mxu0 0.0
    %576 = vmatpush1.xpose.msra.mxu0 0.0
    %577 = vmatprep.subr.mxu0 0.0
    %578 = vmatpush1.xpose.msra.mxu0 0.0
    %579 = vmatprep.subr.mxu0 0.0
    %580 = vmatpush1.xpose.msra.mxu0 0.0
    %581 = vmatprep.subr.mxu0 0.0
    %582 = vmatpush1.xpose.msra.mxu0 0.0
    %583 = vmatprep.subr.mxu0 0.0
    %584 = vmatpush1.xpose.msra.mxu0 0.0
    %585 = vmatprep.subr.mxu0 0.0
    %586 = vmatpush1.xpose.msra.mxu0 0.0
    %587 = vmatprep.subr.mxu0 0.0
    %588 = vmatpush1.xpose.msra.mxu0 0.0
    %589 = vmatprep.subr.mxu0 0.0
    %590 = vmatpush1.xpose.msra.mxu0 0.0
    %591 = vmatprep.subr.mxu0 0.0
    %592 = vmatpush1.xpose.msra.mxu0 0.0
    %593 = vmatprep.subr.mxu0 0.0
    %594 = vmatpush1.xpose.msra.mxu0 0.0
    %595 = vmatprep.subr.mxu0 0.0
    %596 = vmatpush1.xpose.msra.mxu0 0.0
    %597 = vmatprep.subr.mxu0 0.0
    %598 = vmatpush1.xpose.msra.mxu0 0.0
    %599 = vmatprep.subr.mxu0 0.0
    %600 = vmatpush1.xpose.msra.mxu0 0.0
    %601 = vmatprep.subr.mxu0 0.0
    %602 = vmatpush1.xpose.msra.mxu0 0.0
    %603 = vmatprep.subr.mxu0 0.0
    %604 = vmatpush1.xpose.msra.mxu0 0.0
    %605 = vmatprep.subr.mxu0 0.0
    %606 = vmatpush1.xpose.msra.mxu0 0.0
    %607 = vmatprep.subr.mxu0 0.0
    %608 = vmatpush1.xpose.msra.mxu0 0.0
    %609 = vmatprep.subr.mxu0 0.0
    %610 = vmatpush1.xpose.msra.mxu0 0.0
    %611 = vmatprep.mubr.f32.mxu0 0.0
    %612 = vmatmul.mubr.f32.gmra.mrb[0].mxu0 %v524
    %v613 = vpop.f32.mrb[0].mxu0
    %v614 = vadd.f32 0.0, %v613
    %v615 = vpop.f32.mrb[0].mxu0
    %616 = vmatprep.mubr.f32.mxu0 0.0
    %617 = vmatmul.mubr.f32.gmra.mrb[0].mxu0 %v527
    %v618 = vpop.f32.mrb[0].mxu0
    %v619 = vadd.f32 0.0, %v618
    %v620 = vpop.f32.mrb[0].mxu0
    %621 = vmatprep.mubr.f32.mxu0 0.0
    %622 = vmatmul.mubr.f32.gmra.mrb[0].mxu0 %v530
    %v623 = vpop.f32.mrb[0].mxu0
    %v624 = vadd.f32 0.0, %v623
    %v625 = vpop.f32.mrb[0].mxu0
    %626 = vmatprep.mubr.f32.mxu0 0.0
    %627 = vmatmul.mubr.f32.gmra.mrb[0].mxu0 %v533
    %v628 = vpop.f32.mrb[0].mxu0
    %v629 = vadd.f32 0.0, %v628
    %v630 = vpop.f32.mrb[0].mxu0
    %631 = vmatprep.mubr.f32.mxu0 0.0
    %632 = vmatmul.mubr.f32.gmra.mrb[0].mxu0 %v536
    %v633 = vpop.f32.mrb[0].mxu0
    %v634 = vadd.f32 0.0, %v633
    %v635 = vpop.f32.mrb[0].mxu0
    %636 = vmatprep.mubr.f32.mxu0 0.0
    %637 = vmatmul.mubr.f32.gmra.mrb[0].mxu0 %v539
    %v638 = vpop.f32.mrb[0].mxu0
    %v639 = vadd.f32 0.0, %v638
    %v640 = vpop.f32.mrb[0].mxu0
    %641 = vmatprep.mubr.f32.mxu0 0.0
    %642 = vmatmul.mubr.f32.gmra.mrb[0].mxu0 %v542
    %v643 = vpop.f32.mrb[0].mxu0
    %v644 = vadd.f32 0.0, %v643
    %v645 = vpop.f32.mrb[0].mxu0
    %646 = vmatprep.mubr.f32.mxu0 0.0
    %647 = vmatmul.mubr.f32.gmra.mrb[0].mxu0 %v545
    %v648 = vpop.f32.mrb[0].mxu0
    %v649 = vadd.f32 0.0, %v648
    %v650 = vpop.f32.mrb[0].mxu0
    %651 = vdwg.mxu0
    %vm652 = vcmask 64512
    %v654 = vsel %vm652, %v443, 0
    %v657 = vsel %vm652, %v520, 0
    %659 = vmatprep.subr.mxu0 0.0
    %660 = vmatpush1.xpose.msra.mxu0 %v657
    %661 = vmatprep.subr.mxu0 0.0
    %662 = vmatpush1.xpose.msra.mxu0 0.0
    %663 = vmatprep.subr.mxu0 0.0
    %664 = vmatpush1.xpose.msra.mxu0 0.0
    %665 = vmatprep.subr.mxu0 0.0
    %666 = vmatpush1.xpose.msra.mxu0 0.0
    %667 = vmatprep.subr.mxu0 0.0
    %668 = vmatpush1.xpose.msra.mxu0 0.0
    %669 = vmatprep.subr.mxu0 0.0
    %670 = vmatpush1.xpose.msra.mxu0 0.0
    %671 = vmatprep.subr.mxu0 0.0
    %672 = vmatpush1.xpose.msra.mxu0 0.0
    %673 = vmatprep.subr.mxu0 0.0
    %674 = vmatpush1.xpose.msra.mxu0 0.0
    %675 = vmatprep.subr.mxu0 0.0
    %676 = vmatpush1.xpose.msra.mxu0 0.0
    %677 = vmatprep.subr.mxu0 0.0
    %678 = vmatpush1.xpose.msra.mxu0 0.0
    %679 = vmatprep.subr.mxu0 0.0
    %680 = vmatpush1.xpose.msra.mxu0 0.0
    %681 = vmatprep.subr.mxu0 0.0
    %682 = vmatpush1.xpose.msra.mxu0 0.0
    %683 = vmatprep.subr.mxu0 0.0
    %684 = vmatpush1.xpose.msra.mxu0 0.0
    %685 = vmatprep.subr.mxu0 0.0
    %686 = vmatpush1.xpose.msra.mxu0 0.0
    %687 = vmatprep.subr.mxu0 0.0
    %688 = vmatpush1.xpose.msra.mxu0 0.0
    %689 = vmatprep.subr.mxu0 0.0
    %690 = vmatpush1.xpose.msra.mxu0 0.0
    %691 = vmatprep.subr.mxu0 0.0
    %692 = vmatpush1.xpose.msra.mxu0 0.0
    %693 = vmatprep.subr.mxu0 0.0
    %694 = vmatpush1.xpose.msra.mxu0 0.0
    %695 = vmatprep.subr.mxu0 0.0
    %696 = vmatpush1.xpose.msra.mxu0 0.0
    %697 = vmatprep.subr.mxu0 0.0
    %698 = vmatpush1.xpose.msra.mxu0 0.0
    %699 = vmatprep.subr.mxu0 0.0
    %700 = vmatpush1.xpose.msra.mxu0 0.0
    %701 = vmatprep.subr.mxu0 0.0
    %702 = vmatpush1.xpose.msra.mxu0 0.0
    %703 = vmatprep.subr.mxu0 0.0
    %704 = vmatpush1.xpose.msra.mxu0 0.0
    %705 = vmatprep.subr.mxu0 0.0
    %706 = vmatpush1.xpose.msra.mxu0 0.0
    %707 = vmatprep.subr.mxu0 0.0
    %708 = vmatpush1.xpose.msra.mxu0 0.0
    %709 = vmatprep.subr.mxu0 0.0
    %710 = vmatpush1.xpose.msra.mxu0 0.0
    %711 = vmatprep.subr.mxu0 0.0
    %712 = vmatpush1.xpose.msra.mxu0 0.0
    %713 = vmatprep.subr.mxu0 0.0
    %714 = vmatpush1.xpose.msra.mxu0 0.0
    %715 = vmatprep.subr.mxu0 0.0
    %716 = vmatpush1.xpose.msra.mxu0 0.0
    %717 = vmatprep.subr.mxu0 0.0
    %718 = vmatpush1.xpose.msra.mxu0 0.0
    %719 = vmatprep.subr.mxu0 0.0
    %720 = vmatpush1.xpose.msra.mxu0 0.0
    %721 = vmatprep.subr.mxu0 0.0
    %722 = vmatpush1.xpose.msra.mxu0 0.0
    %723 = vmatprep.mubr.f32.mxu0 0.0
    %724 = vmatmul.mubr.f32.gmra.mrb[0].mxu0 %v654
    %v725 = vpop.f32.mrb[0].mxu0
    %v726 = vadd.f32 0.0, %v725
    %v727 = vpop.f32.mrb[0].mxu0
    %728 = vdwg.mxu0
    %v729 = vmul.f32 %v726, 0.35355338
    %730 = vrot.lane.b32.xlu0 %v443, 120
    %v731 = vpop.permute.xlu0 %730
    %732 = vrot.lane.b32.xlu0 %v520, 120
    %v733 = vpop.permute.xlu0 %732
    %v734 = vsel %vm652, %v731, 0
    %v736 = vsel %vm652, %v733, 0
    %738 = vmatprep.subr.mxu0 0.0
    %739 = vmatpush1.xpose.msra.mxu0 %v736
    %740 = vmatprep.subr.mxu0 0.0
    %741 = vmatpush1.xpose.msra.mxu0 0.0
    %742 = vmatprep.subr.mxu0 0.0
    %743 = vmatpush1.xpose.msra.mxu0 0.0
    %744 = vmatprep.subr.mxu0 0.0
    %745 = vmatpush1.xpose.msra.mxu0 0.0
    %746 = vmatprep.subr.mxu0 0.0
    %747 = vmatpush1.xpose.msra.mxu0 0.0
    %748 = vmatprep.subr.mxu0 0.0
    %749 = vmatpush1.xpose.msra.mxu0 0.0
    %750 = vmatprep.subr.mxu0 0.0
    %751 = vmatpush1.xpose.msra.mxu0 0.0
    %752 = vmatprep.subr.mxu0 0.0
    %753 = vmatpush1.xpose.msra.mxu0 0.0
    %754 = vmatprep.subr.mxu0 0.0
    %755 = vmatpush1.xpose.msra.mxu0 0.0
    %756 = vmatprep.subr.mxu0 0.0
    %757 = vmatpush1.xpose.msra.mxu0 0.0
    %758 = vmatprep.subr.mxu0 0.0
    %759 = vmatpush1.xpose.msra.mxu0 0.0
    %760 = vmatprep.subr.mxu0 0.0
    %761 = vmatpush1.xpose.msra.mxu0 0.0
    %762 = vmatprep.subr.mxu0 0.0
    %763 = vmatpush1.xpose.msra.mxu0 0.0
    %764 = vmatprep.subr.mxu0 0.0
    %765 = vmatpush1.xpose.msra.mxu0 0.0
    %766 = vmatprep.subr.mxu0 0.0
    %767 = vmatpush1.xpose.msra.mxu0 0.0
    %768 = vmatprep.subr.mxu0 0.0
    %769 = vmatpush1.xpose.msra.mxu0 0.0
    %770 = vmatprep.subr.mxu0 0.0
    %771 = vmatpush1.xpose.msra.mxu0 0.0
    %772 = vmatprep.subr.mxu0 0.0
    %773 = vmatpush1.xpose.msra.mxu0 0.0
    %774 = vmatprep.subr.mxu0 0.0
    %775 = vmatpush1.xpose.msra.mxu0 0.0
    %776 = vmatprep.subr.mxu0 0.0
    %777 = vmatpush1.xpose.msra.mxu0 0.0
    %778 = vmatprep.subr.mxu0 0.0
    %779 = vmatpush1.xpose.msra.mxu0 0.0
    %780 = vmatprep.subr.mxu0 0.0
    %781 = vmatpush1.xpose.msra.mxu0 0.0
    %782 = vmatprep.subr.mxu0 0.0
    %783 = vmatpush1.xpose.msra.mxu0 0.0
    %784 = vmatprep.subr.mxu0 0.0
    %785 = vmatpush1.xpose.msra.mxu0 0.0
    %786 = vmatprep.subr.mxu0 0.0
    %787 = vmatpush1.xpose.msra.mxu0 0.0
    %788 = vmatprep.subr.mxu0 0.0
    %789 = vmatpush1.xpose.msra.mxu0 0.0
    %790 = vmatprep.subr.mxu0 0.0
    %791 = vmatpush1.xpose.msra.mxu0 0.0
    %792 = vmatprep.subr.mxu0 0.0
    %793 = vmatpush1.xpose.msra.mxu0 0.0
    %794 = vmatprep.subr.mxu0 0.0
    %795 = vmatpush1.xpose.msra.mxu0 0.0
    %796 = vmatprep.subr.mxu0 0.0
    %797 = vmatpush1.xpose.msra.mxu0 0.0
    %798 = vmatprep.subr.mxu0 0.0
    %799 = vmatpush1.xpose.msra.mxu0 0.0
    %800 = vmatprep.subr.mxu0 0.0
    %801 = vmatpush1.xpose.msra.mxu0 0.0
    %802 = vmatprep.mubr.f32.mxu0 0.0
    %803 = vmatmul.mubr.f32.gmra.mrb[0].mxu0 %v734
    %v804 = vpop.f32.mrb[0].mxu0
    %v805 = vadd.f32 0.0, %v804
    %v806 = vpop.f32.mrb[0].mxu0
    %807 = vdwg.mxu0
    %v808 = vmul.f32 %v805, 0.35355338
    %809 = vrot.lane.b32.xlu0 %v443, 112
    %v810 = vpop.permute.xlu0 %809
    %811 = vrot.lane.b32.xlu0 %v520, 112
    %v812 = vpop.permute.xlu0 %811
    %v813 = vsel %vm652, %v810, 0
    %v815 = vsel %vm652, %v812, 0
    %817 = vmatprep.subr.mxu0 0.0
    %818 = vmatpush1.xpose.msra.mxu0 %v815
    %819 = vmatprep.subr.mxu0 0.0
    %820 = vmatpush1.xpose.msra.mxu0 0.0
    %821 = vmatprep.subr.mxu0 0.0
    %822 = vmatpush1.xpose.msra.mxu0 0.0
    %823 = vmatprep.subr.mxu0 0.0
    %824 = vmatpush1.xpose.msra.mxu0 0.0
    %825 = vmatprep.subr.mxu0 0.0
    %826 = vmatpush1.xpose.msra.mxu0 0.0
    %827 = vmatprep.subr.mxu0 0.0
    %828 = vmatpush1.xpose.msra.mxu0 0.0
    %829 = vmatprep.subr.mxu0 0.0
    %830 = vmatpush1.xpose.msra.mxu0 0.0
    %831 = vmatprep.subr.mxu0 0.0
    %832 = vmatpush1.xpose.msra.mxu0 0.0
    %833 = vmatprep.subr.mxu0 0.0
    %834 = vmatpush1.xpose.msra.mxu0 0.0
    %835 = vmatprep.subr.mxu0 0.0
    %836 = vmatpush1.xpose.msra.mxu0 0.0
    %837 = vmatprep.subr.mxu0 0.0
    %838 = vmatpush1.xpose.msra.mxu0 0.0
    %839 = vmatprep.subr.mxu0 0.0
    %840 = vmatpush1.xpose.msra.mxu0 0.0
    %841 = vmatprep.subr.mxu0 0.0
    %842 = vmatpush1.xpose.msra.mxu0 0.0
    %843 = vmatprep.subr.mxu0 0.0
    %844 = vmatpush1.xpose.msra.mxu0 0.0
    %845 = vmatprep.subr.mxu0 0.0
    %846 = vmatpush1.xpose.msra.mxu0 0.0
    %847 = vmatprep.subr.mxu0 0.0
    %848 = vmatpush1.xpose.msra.mxu0 0.0
    %849 = vmatprep.subr.mxu0 0.0
    %850 = vmatpush1.xpose.msra.mxu0 0.0
    %851 = vmatprep.subr.mxu0 0.0
    %852 = vmatpush1.xpose.msra.mxu0 0.0
    %853 = vmatprep.subr.mxu0 0.0
    %854 = vmatpush1.xpose.msra.mxu0 0.0
    %855 = vmatprep.subr.mxu0 0.0
    %856 = vmatpush1.xpose.msra.mxu0 0.0
    %857 = vmatprep.subr.mxu0 0.0
    %858 = vmatpush1.xpose.msra.mxu0 0.0
    %859 = vmatprep.subr.mxu0 0.0
    %860 = vmatpush1.xpose.msra.mxu0 0.0
    %861 = vmatprep.subr.mxu0 0.0
    %862 = vmatpush1.xpose.msra.mxu0 0.0
    %863 = vmatprep.subr.mxu0 0.0
    %864 = vmatpush1.xpose.msra.mxu0 0.0
    %865 = vmatprep.subr.mxu0 0.0
    %866 = vmatpush1.xpose.msra.mxu0 0.0
    %867 = vmatprep.subr.mxu0 0.0
    %868 = vmatpush1.xpose.msra.mxu0 0.0
    %869 = vmatprep.subr.mxu0 0.0
    %870 = vmatpush1.xpose.msra.mxu0 0.0
    %871 = vmatprep.subr.mxu0 0.0
    %872 = vmatpush1.xpose.msra.mxu0 0.0
    %873 = vmatprep.subr.mxu0 0.0
    %874 = vmatpush1.xpose.msra.mxu0 0.0
    %875 = vmatprep.subr.mxu0 0.0
    %876 = vmatpush1.xpose.msra.mxu0 0.0
    %877 = vmatprep.subr.mxu0 0.0
    %878 = vmatpush1.xpose.msra.mxu0 0.0
    %879 = vmatprep.subr.mxu0 0.0
    %880 = vmatpush1.xpose.msra.mxu0 0.0
    %881 = vmatprep.mubr.f32.mxu0 0.0
    %882 = vmatmul.mubr.f32.gmra.mrb[0].mxu0 %v813
    %v883 = vpop.f32.mrb[0].mxu0
    %v884 = vadd.f32 0.0, %v883
    %v885 = vpop.f32.mrb[0].mxu0
    %886 = vdwg.mxu0
    %v887 = vmul.f32 %v884, 0.35355338
    %888 = vrot.lane.b32.xlu0 %v443, 104
    %v889 = vpop.permute.xlu0 %888
    %890 = vrot.lane.b32.xlu0 %v520, 104
    %v891 = vpop.permute.xlu0 %890
    %v892 = vsel %vm652, %v889, 0
    %v894 = vsel %vm652, %v891, 0
    %896 = vmatprep.subr.mxu0 0.0
    %897 = vmatpush1.xpose.msra.mxu0 %v894
    %898 = vmatprep.subr.mxu0 0.0
    %899 = vmatpush1.xpose.msra.mxu0 0.0
    %900 = vmatprep.subr.mxu0 0.0
    %901 = vmatpush1.xpose.msra.mxu0 0.0
    %902 = vmatprep.subr.mxu0 0.0
    %903 = vmatpush1.xpose.msra.mxu0 0.0
    %904 = vmatprep.subr.mxu0 0.0
    %905 = vmatpush1.xpose.msra.mxu0 0.0
    %906 = vmatprep.subr.mxu0 0.0
    %907 = vmatpush1.xpose.msra.mxu0 0.0
    %908 = vmatprep.subr.mxu0 0.0
    %909 = vmatpush1.xpose.msra.mxu0 0.0
    %910 = vmatprep.subr.mxu0 0.0
    %911 = vmatpush1.xpose.msra.mxu0 0.0
    %912 = vmatprep.subr.mxu0 0.0
    %913 = vmatpush1.xpose.msra.mxu0 0.0
    %914 = vmatprep.subr.mxu0 0.0
    %915 = vmatpush1.xpose.msra.mxu0 0.0
    %916 = vmatprep.subr.mxu0 0.0
    %917 = vmatpush1.xpose.msra.mxu0 0.0
    %918 = vmatprep.subr.mxu0 0.0
    %919 = vmatpush1.xpose.msra.mxu0 0.0
    %920 = vmatprep.subr.mxu0 0.0
    %921 = vmatpush1.xpose.msra.mxu0 0.0
    %922 = vmatprep.subr.mxu0 0.0
    %923 = vmatpush1.xpose.msra.mxu0 0.0
    %924 = vmatprep.subr.mxu0 0.0
    %925 = vmatpush1.xpose.msra.mxu0 0.0
    %926 = vmatprep.subr.mxu0 0.0
    %927 = vmatpush1.xpose.msra.mxu0 0.0
    %928 = vmatprep.subr.mxu0 0.0
    %929 = vmatpush1.xpose.msra.mxu0 0.0
    %930 = vmatprep.subr.mxu0 0.0
    %931 = vmatpush1.xpose.msra.mxu0 0.0
    %932 = vmatprep.subr.mxu0 0.0
    %933 = vmatpush1.xpose.msra.mxu0 0.0
    %934 = vmatprep.subr.mxu0 0.0
    %935 = vmatpush1.xpose.msra.mxu0 0.0
    %936 = vmatprep.subr.mxu0 0.0
    %937 = vmatpush1.xpose.msra.mxu0 0.0
    %938 = vmatprep.subr.mxu0 0.0
    %939 = vmatpush1.xpose.msra.mxu0 0.0
    %940 = vmatprep.subr.mxu0 0.0
    %941 = vmatpush1.xpose.msra.mxu0 0.0
    %942 = vmatprep.subr.mxu0 0.0
    %943 = vmatpush1.xpose.msra.mxu0 0.0
    %944 = vmatprep.subr.mxu0 0.0
    %945 = vmatpush1.xpose.msra.mxu0 0.0
    %946 = vmatprep.subr.mxu0 0.0
    %947 = vmatpush1.xpose.msra.mxu0 0.0
    %948 = vmatprep.subr.mxu0 0.0
    %949 = vmatpush1.xpose.msra.mxu0 0.0
    %950 = vmatprep.subr.mxu0 0.0
    %951 = vmatpush1.xpose.msra.mxu0 0.0
    %952 = vmatprep.subr.mxu0 0.0
    %953 = vmatpush1.xpose.msra.mxu0 0.0
    %954 = vmatprep.subr.mxu0 0.0
    %955 = vmatpush1.xpose.msra.mxu0 0.0
    %956 = vmatprep.subr.mxu0 0.0
    %957 = vmatpush1.xpose.msra.mxu0 0.0
    %958 = vmatprep.subr.mxu0 0.0
    %959 = vmatpush1.xpose.msra.mxu0 0.0
    %960 = vmatprep.mubr.f32.mxu0 0.0
    %961 = vmatmul.mubr.f32.gmra.mrb[0].mxu0 %v892
    %v962 = vpop.f32.mrb[0].mxu0
    %v963 = vadd.f32 0.0, %v962
    %v964 = vpop.f32.mrb[0].mxu0
    %965 = vdwg.mxu0
    %v966 = vmul.f32 %v963, 0.35355338
    %967 = vrot.lane.b32.xlu0 %v443, 96
    %v968 = vpop.permute.xlu0 %967
    %969 = vrot.lane.b32.xlu0 %v520, 96
    %v970 = vpop.permute.xlu0 %969
    %v971 = vsel %vm652, %v968, 0
    %v973 = vsel %vm652, %v970, 0
    %975 = vmatprep.subr.mxu0 0.0
    %976 = vmatpush1.xpose.msra.mxu0 %v973
    %977 = vmatprep.subr.mxu0 0.0
    %978 = vmatpush1.xpose.msra.mxu0 0.0
    %979 = vmatprep.subr.mxu0 0.0
    %980 = vmatpush1.xpose.msra.mxu0 0.0
    %981 = vmatprep.subr.mxu0 0.0
    %982 = vmatpush1.xpose.msra.mxu0 0.0
    %983 = vmatprep.subr.mxu0 0.0
    %984 = vmatpush1.xpose.msra.mxu0 0.0
    %985 = vmatprep.subr.mxu0 0.0
    %986 = vmatpush1.xpose.msra.mxu0 0.0
    %987 = vmatprep.subr.mxu0 0.0
    %988 = vmatpush1.xpose.msra.mxu0 0.0
    %989 = vmatprep.subr.mxu0 0.0
    %990 = vmatpush1.xpose.msra.mxu0 0.0
    %991 = vmatprep.subr.mxu0 0.0
    %992 = vmatpush1.xpose.msra.mxu0 0.0
    %993 = vmatprep.subr.mxu0 0.0
    %994 = vmatpush1.xpose.msra.mxu0 0.0
    %995 = vmatprep.subr.mxu0 0.0
    %996 = vmatpush1.xpose.msra.mxu0 0.0
    %997 = vmatprep.subr.mxu0 0.0
    %998 = vmatpush1.xpose.msra.mxu0 0.0
    %999 = vmatprep.subr.mxu0 0.0
    %1000 = vmatpush1.xpose.msra.mxu0 0.0
    %1001 = vmatprep.subr.mxu0 0.0
    %1002 = vmatpush1.xpose.msra.mxu0 0.0
    %1003 = vmatprep.subr.mxu0 0.0
    %1004 = vmatpush1.xpose.msra.mxu0 0.0
    %1005 = vmatprep.subr.mxu0 0.0
    %1006 = vmatpush1.xpose.msra.mxu0 0.0
    %1007 = vmatprep.subr.mxu0 0.0
    %1008 = vmatpush1.xpose.msra.mxu0 0.0
    %1009 = vmatprep.subr.mxu0 0.0
    %1010 = vmatpush1.xpose.msra.mxu0 0.0
    %1011 = vmatprep.subr.mxu0 0.0
    %1012 = vmatpush1.xpose.msra.mxu0 0.0
    %1013 = vmatprep.subr.mxu0 0.0
    %1014 = vmatpush1.xpose.msra.mxu0 0.0
    %1015 = vmatprep.subr.mxu0 0.0
    %1016 = vmatpush1.xpose.msra.mxu0 0.0
    %1017 = vmatprep.subr.mxu0 0.0
    %1018 = vmatpush1.xpose.msra.mxu0 0.0
    %1019 = vmatprep.subr.mxu0 0.0
    %1020 = vmatpush1.xpose.msra.mxu0 0.0
    %1021 = vmatprep.subr.mxu0 0.0
    %1022 = vmatpush1.xpose.msra.mxu0 0.0
    %1023 = vmatprep.subr.mxu0 0.0
    %1024 = vmatpush1.xpose.msra.mxu0 0.0
    %1025 = vmatprep.subr.mxu0 0.0
    %1026 = vmatpush1.xpose.msra.mxu0 0.0
    %1027 = vmatprep.subr.mxu0 0.0
    %1028 = vmatpush1.xpose.msra.mxu0 0.0
    %1029 = vmatprep.subr.mxu0 0.0
    %1030 = vmatpush1.xpose.msra.mxu0 0.0
    %1031 = vmatprep.subr.mxu0 0.0
    %1032 = vmatpush1.xpose.msra.mxu0 0.0
    %1033 = vmatprep.subr.mxu0 0.0
    %1034 = vmatpush1.xpose.msra.mxu0 0.0
    %1035 = vmatprep.subr.mxu0 0.0
    %1036 = vmatpush1.xpose.msra.mxu0 0.0
    %1037 = vmatprep.subr.mxu0 0.0
    %1038 = vmatpush1.xpose.msra.mxu0 0.0
    %1039 = vmatprep.mubr.f32.mxu0 0.0
    %1040 = vmatmul.mubr.f32.gmra.mrb[0].mxu0 %v971
    %v1041 = vpop.f32.mrb[0].mxu0
    %v1042 = vadd.f32 0.0, %v1041
    %v1043 = vpop.f32.mrb[0].mxu0
    %1044 = vdwg.mxu0
    %v1045 = vmul.f32 %v1042, 0.35355338
    %1046 = vrot.lane.b32.xlu0 %v443, 88
    %v1047 = vpop.permute.xlu0 %1046
    %1048 = vrot.lane.b32.xlu0 %v520, 88
    %v1049 = vpop.permute.xlu0 %1048
    %v1050 = vsel %vm652, %v1047, 0
    %v1052 = vsel %vm652, %v1049, 0
    %1054 = vmatprep.subr.mxu0 0.0
    %1055 = vmatpush1.xpose.msra.mxu0 %v1052
    %1056 = vmatprep.subr.mxu0 0.0
    %1057 = vmatpush1.xpose.msra.mxu0 0.0
    %1058 = vmatprep.subr.mxu0 0.0
    %1059 = vmatpush1.xpose.msra.mxu0 0.0
    %1060 = vmatprep.subr.mxu0 0.0
    %1061 = vmatpush1.xpose.msra.mxu0 0.0
    %1062 = vmatprep.subr.mxu0 0.0
    %1063 = vmatpush1.xpose.msra.mxu0 0.0
    %1064 = vmatprep.subr.mxu0 0.0
    %1065 = vmatpush1.xpose.msra.mxu0 0.0
    %1066 = vmatprep.subr.mxu0 0.0
    %1067 = vmatpush1.xpose.msra.mxu0 0.0
    %1068 = vmatprep.subr.mxu0 0.0
    %1069 = vmatpush1.xpose.msra.mxu0 0.0
    %1070 = vmatprep.subr.mxu0 0.0
    %1071 = vmatpush1.xpose.msra.mxu0 0.0
    %1072 = vmatprep.subr.mxu0 0.0
    %1073 = vmatpush1.xpose.msra.mxu0 0.0
    %1074 = vmatprep.subr.mxu0 0.0
    %1075 = vmatpush1.xpose.msra.mxu0 0.0
    %1076 = vmatprep.subr.mxu0 0.0
    %1077 = vmatpush1.xpose.msra.mxu0 0.0
    %1078 = vmatprep.subr.mxu0 0.0
    %1079 = vmatpush1.xpose.msra.mxu0 0.0
    %1080 = vmatprep.subr.mxu0 0.0
    %1081 = vmatpush1.xpose.msra.mxu0 0.0
    %1082 = vmatprep.subr.mxu0 0.0
    %1083 = vmatpush1.xpose.msra.mxu0 0.0
    %1084 = vmatprep.subr.mxu0 0.0
    %1085 = vmatpush1.xpose.msra.mxu0 0.0
    %1086 = vmatprep.subr.mxu0 0.0
    %1087 = vmatpush1.xpose.msra.mxu0 0.0
    %1088 = vmatprep.subr.mxu0 0.0
    %1089 = vmatpush1.xpose.msra.mxu0 0.0
    %1090 = vmatprep.subr.mxu0 0.0
    %1091 = vmatpush1.xpose.msra.mxu0 0.0
    %1092 = vmatprep.subr.mxu0 0.0
    %1093 = vmatpush1.xpose.msra.mxu0 0.0
    %1094 = vmatprep.subr.mxu0 0.0
    %1095 = vmatpush1.xpose.msra.mxu0 0.0
    %1096 = vmatprep.subr.mxu0 0.0
    %1097 = vmatpush1.xpose.msra.mxu0 0.0
    %1098 = vmatprep.subr.mxu0 0.0
    %1099 = vmatpush1.xpose.msra.mxu0 0.0
    %1100 = vmatprep.subr.mxu0 0.0
    %1101 = vmatpush1.xpose.msra.mxu0 0.0
    %1102 = vmatprep.subr.mxu0 0.0
    %1103 = vmatpush1.xpose.msra.mxu0 0.0
    %1104 = vmatprep.subr.mxu0 0.0
    %1105 = vmatpush1.xpose.msra.mxu0 0.0
    %1106 = vmatprep.subr.mxu0 0.0
    %1107 = vmatpush1.xpose.msra.mxu0 0.0
    %1108 = vmatprep.subr.mxu0 0.0
    %1109 = vmatpush1.xpose.msra.mxu0 0.0
    %1110 = vmatprep.subr.mxu0 0.0
    %1111 = vmatpush1.xpose.msra.mxu0 0.0
    %1112 = vmatprep.subr.mxu0 0.0
    %1113 = vmatpush1.xpose.msra.mxu0 0.0
    %1114 = vmatprep.subr.mxu0 0.0
    %1115 = vmatpush1.xpose.msra.mxu0 0.0
    %1116 = vmatprep.subr.mxu0 0.0
    %1117 = vmatpush1.xpose.msra.mxu0 0.0
    %1118 = vmatprep.mubr.f32.mxu0 0.0
    %1119 = vmatmul.mubr.f32.gmra.mrb[0].mxu0 %v1050
    %v1120 = vpop.f32.mrb[0].mxu0
    %v1121 = vadd.f32 0.0, %v1120
    %v1122 = vpop.f32.mrb[0].mxu0
    %1123 = vdwg.mxu0
    %v1124 = vmul.f32 %v1121, 0.35355338
    %1125 = vrot.lane.b32.xlu0 %v443, 80
    %v1126 = vpop.permute.xlu0 %1125
    %1127 = vrot.lane.b32.xlu0 %v520, 80
    %v1128 = vpop.permute.xlu0 %1127
    %v1129 = vsel %vm652, %v1126, 0
    %v1131 = vsel %vm652, %v1128, 0
    %1133 = vmatprep.subr.mxu0 0.0
    %1134 = vmatpush1.xpose.msra.mxu0 %v1131
    %1135 = vmatprep.subr.mxu0 0.0
    %1136 = vmatpush1.xpose.msra.mxu0 0.0
    %1137 = vmatprep.subr.mxu0 0.0
    %1138 = vmatpush1.xpose.msra.mxu0 0.0
    %1139 = vmatprep.subr.mxu0 0.0
    %1140 = vmatpush1.xpose.msra.mxu0 0.0
    %1141 = vmatprep.subr.mxu0 0.0
    %1142 = vmatpush1.xpose.msra.mxu0 0.0
    %1143 = vmatprep.subr.mxu0 0.0
    %1144 = vmatpush1.xpose.msra.mxu0 0.0
    %1145 = vmatprep.subr.mxu0 0.0
    %1146 = vmatpush1.xpose.msra.mxu0 0.0
    %1147 = vmatprep.subr.mxu0 0.0
    %1148 = vmatpush1.xpose.msra.mxu0 0.0
    %1149 = vmatprep.subr.mxu0 0.0
    %1150 = vmatpush1.xpose.msra.mxu0 0.0
    %1151 = vmatprep.subr.mxu0 0.0
    %1152 = vmatpush1.xpose.msra.mxu0 0.0
    %1153 = vmatprep.subr.mxu0 0.0
    %1154 = vmatpush1.xpose.msra.mxu0 0.0
    %1155 = vmatprep.subr.mxu0 0.0
    %1156 = vmatpush1.xpose.msra.mxu0 0.0
    %1157 = vmatprep.subr.mxu0 0.0
    %1158 = vmatpush1.xpose.msra.mxu0 0.0
    %1159 = vmatprep.subr.mxu0 0.0
    %1160 = vmatpush1.xpose.msra.mxu0 0.0
    %1161 = vmatprep.subr.mxu0 0.0
    %1162 = vmatpush1.xpose.msra.mxu0 0.0
    %1163 = vmatprep.subr.mxu0 0.0
    %1164 = vmatpush1.xpose.msra.mxu0 0.0
    %1165 = vmatprep.subr.mxu0 0.0
    %1166 = vmatpush1.xpose.msra.mxu0 0.0
    %1167 = vmatprep.subr.mxu0 0.0
    %1168 = vmatpush1.xpose.msra.mxu0 0.0
    %1169 = vmatprep.subr.mxu0 0.0
    %1170 = vmatpush1.xpose.msra.mxu0 0.0
    %1171 = vmatprep.subr.mxu0 0.0
    %1172 = vmatpush1.xpose.msra.mxu0 0.0
    %1173 = vmatprep.subr.mxu0 0.0
    %1174 = vmatpush1.xpose.msra.mxu0 0.0
    %1175 = vmatprep.subr.mxu0 0.0
    %1176 = vmatpush1.xpose.msra.mxu0 0.0
    %1177 = vmatprep.subr.mxu0 0.0
    %1178 = vmatpush1.xpose.msra.mxu0 0.0
    %1179 = vmatprep.subr.mxu0 0.0
    %1180 = vmatpush1.xpose.msra.mxu0 0.0
    %1181 = vmatprep.subr.mxu0 0.0
    %1182 = vmatpush1.xpose.msra.mxu0 0.0
    %1183 = vmatprep.subr.mxu0 0.0
    %1184 = vmatpush1.xpose.msra.mxu0 0.0
    %1185 = vmatprep.subr.mxu0 0.0
    %1186 = vmatpush1.xpose.msra.mxu0 0.0
    %1187 = vmatprep.subr.mxu0 0.0
    %1188 = vmatpush1.xpose.msra.mxu0 0.0
    %1189 = vmatprep.subr.mxu0 0.0
    %1190 = vmatpush1.xpose.msra.mxu0 0.0
    %1191 = vmatprep.subr.mxu0 0.0
    %1192 = vmatpush1.xpose.msra.mxu0 0.0
    %1193 = vmatprep.subr.mxu0 0.0
    %1194 = vmatpush1.xpose.msra.mxu0 0.0
    %1195 = vmatprep.subr.mxu0 0.0
    %1196 = vmatpush1.xpose.msra.mxu0 0.0
    %1197 = vmatprep.mubr.f32.mxu0 0.0
    %1198 = vmatmul.mubr.f32.gmra.mrb[0].mxu0 %v1129
    %v1199 = vpop.f32.mrb[0].mxu0
    %v1200 = vadd.f32 0.0, %v1199
    %v1201 = vpop.f32.mrb[0].mxu0
    %1202 = vdwg.mxu0
    %v1203 = vmul.f32 %v1200, 0.35355338
    %1204 = vrot.lane.b32.xlu0 %v443, 72
    %v1205 = vpop.permute.xlu0 %1204
    %1206 = vrot.lane.b32.xlu0 %v520, 72
    %v1207 = vpop.permute.xlu0 %1206
    %v1208 = vsel %vm652, %v1205, 0
    %v1210 = vsel %vm652, %v1207, 0
    %1212 = vmatprep.subr.mxu0 0.0
    %1213 = vmatpush1.xpose.msra.mxu0 %v1210
    %1214 = vmatprep.subr.mxu0 0.0
    %1215 = vmatpush1.xpose.msra.mxu0 0.0
    %1216 = vmatprep.subr.mxu0 0.0
    %1217 = vmatpush1.xpose.msra.mxu0 0.0
    %1218 = vmatprep.subr.mxu0 0.0
    %1219 = vmatpush1.xpose.msra.mxu0 0.0
    %1220 = vmatprep.subr.mxu0 0.0
    %1221 = vmatpush1.xpose.msra.mxu0 0.0
    %1222 = vmatprep.subr.mxu0 0.0
    %1223 = vmatpush1.xpose.msra.mxu0 0.0
    %1224 = vmatprep.subr.mxu0 0.0
    %1225 = vmatpush1.xpose.msra.mxu0 0.0
    %1226 = vmatprep.subr.mxu0 0.0
    %1227 = vmatpush1.xpose.msra.mxu0 0.0
    %1228 = vmatprep.subr.mxu0 0.0
    %1229 = vmatpush1.xpose.msra.mxu0 0.0
    %1230 = vmatprep.subr.mxu0 0.0
    %1231 = vmatpush1.xpose.msra.mxu0 0.0
    %1232 = vmatprep.subr.mxu0 0.0
    %1233 = vmatpush1.xpose.msra.mxu0 0.0
    %1234 = vmatprep.subr.mxu0 0.0
    %1235 = vmatpush1.xpose.msra.mxu0 0.0
    %1236 = vmatprep.subr.mxu0 0.0
    %1237 = vmatpush1.xpose.msra.mxu0 0.0
    %1238 = vmatprep.subr.mxu0 0.0
    %1239 = vmatpush1.xpose.msra.mxu0 0.0
    %1240 = vmatprep.subr.mxu0 0.0
    %1241 = vmatpush1.xpose.msra.mxu0 0.0
    %1242 = vmatprep.subr.mxu0 0.0
    %1243 = vmatpush1.xpose.msra.mxu0 0.0
    %1244 = vmatprep.subr.mxu0 0.0
    %1245 = vmatpush1.xpose.msra.mxu0 0.0
    %1246 = vmatprep.subr.mxu0 0.0
    %1247 = vmatpush1.xpose.msra.mxu0 0.0
    %1248 = vmatprep.subr.mxu0 0.0
    %1249 = vmatpush1.xpose.msra.mxu0 0.0
    %1250 = vmatprep.subr.mxu0 0.0
    %1251 = vmatpush1.xpose.msra.mxu0 0.0
    %1252 = vmatprep.subr.mxu0 0.0
    %1253 = vmatpush1.xpose.msra.mxu0 0.0
    %1254 = vmatprep.subr.mxu0 0.0
    %1255 = vmatpush1.xpose.msra.mxu0 0.0
    %1256 = vmatprep.subr.mxu0 0.0
    %1257 = vmatpush1.xpose.msra.mxu0 0.0
    %1258 = vmatprep.subr.mxu0 0.0
    %1259 = vmatpush1.xpose.msra.mxu0 0.0
    %1260 = vmatprep.subr.mxu0 0.0
    %1261 = vmatpush1.xpose.msra.mxu0 0.0
    %1262 = vmatprep.subr.mxu0 0.0
    %1263 = vmatpush1.xpose.msra.mxu0 0.0
    %1264 = vmatprep.subr.mxu0 0.0
    %1265 = vmatpush1.xpose.msra.mxu0 0.0
    %1266 = vmatprep.subr.mxu0 0.0
    %1267 = vmatpush1.xpose.msra.mxu0 0.0
    %1268 = vmatprep.subr.mxu0 0.0
    %1269 = vmatpush1.xpose.msra.mxu0 0.0
    %1270 = vmatprep.subr.mxu0 0.0
    %1271 = vmatpush1.xpose.msra.mxu0 0.0
    %1272 = vmatprep.subr.mxu0 0.0
    %1273 = vmatpush1.xpose.msra.mxu0 0.0
    %1274 = vmatprep.subr.mxu0 0.0
    %1275 = vmatpush1.xpose.msra.mxu0 0.0
    %1276 = vmatprep.mubr.f32.mxu0 0.0
    %1277 = vmatmul.mubr.f32.gmra.mrb[0].mxu0 %v1208
    %v1278 = vpop.f32.mrb[0].mxu0
    %v1279 = vadd.f32 0.0, %v1278
    %v1280 = vpop.f32.mrb[0].mxu0
    %1281 = vdwg.mxu0
    %v1282 = vmul.f32 %v1279, 0.35355338
    %vm1283 = vcmask 48128
    %v1284 = vsel %vm1283, %v729, -inf
    %1285 = vmax.xlane.f32.xlu0 %v1284
    %v1286 = vpop.xlane.xlu0 %1285
    %v1287 = vsel %vm1283, %v808, -inf
    %1288 = vmax.xlane.f32.xlu0 %v1287
    %v1289 = vpop.xlane.xlu0 %1288
    %v1290 = vsel %vm1283, %v887, -inf
    %1291 = vmax.xlane.f32.xlu0 %v1290
    %v1292 = vpop.xlane.xlu0 %1291
    %v1293 = vsel %vm1283, %v966, -inf
    %1294 = vmax.xlane.f32.xlu0 %v1293
    %v1295 = vpop.xlane.xlu0 %1294
    %v1296 = vsel %vm1283, %v1045, -inf
    %1297 = vmax.xlane.f32.xlu0 %v1296
    %v1298 = vpop.xlane.xlu0 %1297
    %v1299 = vsel %vm1283, %v1124, -inf
    %1300 = vmax.xlane.f32.xlu0 %v1299
    %v1301 = vpop.xlane.xlu0 %1300
    %v1302 = vsel %vm1283, %v1203, -inf
    %1303 = vmax.xlane.f32.xlu0 %v1302
    %v1304 = vpop.xlane.xlu0 %1303
    %v1305 = vsel %vm1283, %v1282, -inf
    %1306 = vmax.xlane.f32.xlu0 %v1305
    %v1307 = vpop.xlane.xlu0 %1306
    %v1308 = vsub.f32 %v729, %v1286
    %v1309 = vsub.f32 %v808, %v1289
    %v1310 = vsub.f32 %v887, %v1292
    %v1311 = vsub.f32 %v966, %v1295
    %v1312 = vsub.f32 %v1045, %v1298
    %v1313 = vsub.f32 %v1124, %v1301
    %v1314 = vsub.f32 %v1203, %v1304
    %v1315 = vsub.f32 %v1282, %v1307
    %v1316 = vmul.f32 %v1308, 1.442695
    %v1317 = vpow.pop %v1316
    %v1318 = vmul.f32 %v1309, 1.442695
    %v1319 = vpow.pop %v1318
    %v1320 = vmul.f32 %v1310, 1.442695
    %v1321 = vpow.pop %v1320
    %v1322 = vmul.f32 %v1311, 1.442695
    %v1323 = vpow.pop %v1322
    %v1324 = vmul.f32 %v1312, 1.442695
    %v1325 = vpow.pop %v1324
    %v1326 = vmul.f32 %v1313, 1.442695
    %v1327 = vpow.pop %v1326
    %v1328 = vmul.f32 %v1314, 1.442695
    %v1329 = vpow.pop %v1328
    %v1330 = vmul.f32 %v1315, 1.442695
    %v1331 = vpow.pop %v1330
    %v1332 = vsel %vm1283, %v1317, 0.0
    %1333 = vadd.xlane.f32.xlu0 %v1332
    %v1334 = vpop.xlane.xlu0 %1333
    %v1335 = vsel %vm1283, %v1319, 0.0
    %1336 = vadd.xlane.f32.xlu0 %v1335
    %v1337 = vpop.xlane.xlu0 %1336
    %v1338 = vsel %vm1283, %v1321, 0.0
    %1339 = vadd.xlane.f32.xlu0 %v1338
    %v1340 = vpop.xlane.xlu0 %1339
    %v1341 = vsel %vm1283, %v1323, 0.0
    %1342 = vadd.xlane.f32.xlu0 %v1341
    %v1343 = vpop.xlane.xlu0 %1342
    %v1344 = vsel %vm1283, %v1325, 0.0
    %1345 = vadd.xlane.f32.xlu0 %v1344
    %v1346 = vpop.xlane.xlu0 %1345
    %v1347 = vsel %vm1283, %v1327, 0.0
    %1348 = vadd.xlane.f32.xlu0 %v1347
    %v1349 = vpop.xlane.xlu0 %1348
    %v1350 = vsel %vm1283, %v1329, 0.0
    %1351 = vadd.xlane.f32.xlu0 %v1350
    %v1352 = vpop.xlane.xlu0 %1351
    %v1353 = vsel %vm1283, %v1331, 0.0
    %1354 = vadd.xlane.f32.xlu0 %v1353
    %v1355 = vpop.xlane.xlu0 %1354
    %v1356 = vrcp.pop %v1334
    %v1357 = vrcp.pop %v1337
    %v1358 = vrcp.pop %v1340
    %v1359 = vrcp.pop %v1343
    %v1360 = vrcp.pop %v1346
    %v1361 = vrcp.pop %v1349
    %v1362 = vrcp.pop %v1352
    %v1363 = vrcp.pop %v1355
    %v1364 = vmul.f32 %v1317, %v1356
    %v1365 = vmul.f32 %v1319, %v1357
    %v1366 = vmul.f32 %v1321, %v1358
    %v1367 = vmul.f32 %v1323, %v1359
    %v1368 = vmul.f32 %v1325, %v1360
    %v1369 = vmul.f32 %v1327, %v1361
    %v1370 = vmul.f32 %v1329, %v1362
    %v1371 = vmul.f32 %v1331, %v1363
    %v1372 = vmul.f32 %v1364, %v614
    %v1373 = vmul.f32 %v1365, %v619
    %v1374 = vmul.f32 %v1366, %v624
    %v1375 = vmul.f32 %v1367, %v629
    %v1376 = vmul.f32 %v1368, %v634
    %v1377 = vmul.f32 %v1369, %v639
    %v1378 = vmul.f32 %v1370, %v644
    %v1379 = vmul.f32 %v1371, %v649
    %v1380 = vsel %vm1283, %v1372, 0.0
    %1381 = vadd.xlane.f32.xlu0 %v1380
    %v1382 = vpop.xlane.xlu0 %1381
    %v1383 = vsel %vm1283, %v1373, 0.0
    %1384 = vadd.xlane.f32.xlu0 %v1383
    %v1385 = vpop.xlane.xlu0 %1384
    %v1386 = vsel %vm1283, %v1374, 0.0
    %1387 = vadd.xlane.f32.xlu0 %v1386
    %v1388 = vpop.xlane.xlu0 %1387
    %v1389 = vsel %vm1283, %v1375, 0.0
    %1390 = vadd.xlane.f32.xlu0 %v1389
    %v1391 = vpop.xlane.xlu0 %1390
    %v1392 = vsel %vm1283, %v1376, 0.0
    %1393 = vadd.xlane.f32.xlu0 %v1392
    %v1394 = vpop.xlane.xlu0 %1393
    %v1395 = vsel %vm1283, %v1377, 0.0
    %1396 = vadd.xlane.f32.xlu0 %v1395
    %v1397 = vpop.xlane.xlu0 %1396
    %v1398 = vsel %vm1283, %v1378, 0.0
    %1399 = vadd.xlane.f32.xlu0 %v1398
    %v1400 = vpop.xlane.xlu0 %1399
    %v1401 = vsel %vm1283, %v1379, 0.0
    %1402 = vadd.xlane.f32.xlu0 %v1401
    %v1403 = vpop.xlane.xlu0 %1402
    %v1404 = vlaneseq
    %v1405 = vshrl.u32 %v1404, 7
    %v1406 = vsub.s32 0, %v1405
    %v1407 = vrot.slane %v136, %v1406
    %v1409 = vsel %vm141, %v26, 0
    %1411 = vmatprep.subr.mxu0 0.0
    %1412 = vmatpush1.msra.mxu0 %v1382
    %1413 = vmatprep.subr.mxu0 0.0
    %1414 = vmatpush1.msra.mxu0 %v1385
    %1415 = vmatprep.subr.mxu0 0.0
    %1416 = vmatpush1.msra.mxu0 %v1388
    %1417 = vmatprep.subr.mxu0 0.0
    %1418 = vmatpush1.msra.mxu0 %v1391
    %1419 = vmatprep.subr.mxu0 0.0
    %1420 = vmatpush1.msra.mxu0 %v1394
    %1421 = vmatprep.subr.mxu0 0.0
    %1422 = vmatpush1.msra.mxu0 %v1397
    %1423 = vmatprep.subr.mxu0 0.0
    %1424 = vmatpush1.msra.mxu0 %v1400
    %1425 = vmatprep.subr.mxu0 0.0
    %1426 = vmatpush1.msra.mxu0 %v1403
    %1427 = vmatprep.subr.mxu0 0.0
    %1428 = vmatpush1.msra.mxu0 0.0
    %1429 = vmatprep.subr.mxu0 0.0
    %1430 = vmatpush1.msra.mxu0 0.0
    %1431 = vmatprep.subr.mxu0 0.0
    %1432 = vmatpush1.msra.mxu0 0.0
    %1433 = vmatprep.subr.mxu0 0.0
    %1434 = vmatpush1.msra.mxu0 0.0
    %1435 = vmatprep.subr.mxu0 0.0
    %1436 = vmatpush1.msra.mxu0 0.0
    %1437 = vmatprep.subr.mxu0 0.0
    %1438 = vmatpush1.msra.mxu0 0.0
    %1439 = vmatprep.subr.mxu0 0.0
    %1440 = vmatpush1.msra.mxu0 0.0
    %1441 = vmatprep.subr.mxu0 0.0
    %1442 = vmatpush1.msra.mxu0 0.0
    %1443 = vmatprep.subr.mxu0 0.0
    %1444 = vmatpush1.msra.mxu0 0.0
    %1445 = vmatprep.subr.mxu0 0.0
    %1446 = vmatpush1.msra.mxu0 0.0
    %1447 = vmatprep.subr.mxu0 0.0
    %1448 = vmatpush1.msra.mxu0 0.0
    %1449 = vmatprep.subr.mxu0 0.0
    %1450 = vmatpush1.msra.mxu0 0.0
    %1451 = vmatprep.subr.mxu0 0.0
    %1452 = vmatpush1.msra.mxu0 0.0
    %1453 = vmatprep.subr.mxu0 0.0
    %1454 = vmatpush1.msra.mxu0 0.0
    %1455 = vmatprep.subr.mxu0 0.0
    %1456 = vmatpush1.msra.mxu0 0.0
    %1457 = vmatprep.subr.mxu0 0.0
    %1458 = vmatpush1.msra.mxu0 0.0
    %1459 = vmatprep.subr.mxu0 0.0
    %1460 = vmatpush1.msra.mxu0 0.0
    %1461 = vmatprep.subr.mxu0 0.0
    %1462 = vmatpush1.msra.mxu0 0.0
    %1463 = vmatprep.subr.mxu0 0.0
    %1464 = vmatpush1.msra.mxu0 0.0
    %1465 = vmatprep.subr.mxu0 0.0
    %1466 = vmatpush1.msra.mxu0 0.0
    %1467 = vmatprep.subr.mxu0 0.0
    %1468 = vmatpush1.msra.mxu0 0.0
    %1469 = vmatprep.subr.mxu0 0.0
    %1470 = vmatpush1.msra.mxu0 0.0
    %1471 = vmatprep.subr.mxu0 0.0
    %1472 = vmatpush1.msra.mxu0 0.0
    %1473 = vmatprep.subr.mxu0 0.0
    %1474 = vmatpush1.msra.mxu0 0.0
    %1475 = vmatprep.mubr.f32.mxu0 0.0
    %1476 = vmatmul.mubr.f32.gmra.mrb[0].mxu0 %v1409
    %v1477 = vpop.f32.mrb[0].mxu0
    %v1478 = vadd.f32 %v1407, %v1477
    %v1479 = vpop.f32.mrb[0].mxu0
    %1480 = vdwg.mxu0
    %v1481 = vlaneseq
    %v1482 = vshrl.u32 %v1481, 7
    %v1483 = vsub.s32 0, %v1482
    %v1484 = vrot.slane %v27, %v1483
    %1486 = vset.pattern.permute.xlu0 0
    %1487 = vperm.xlu0 %1486, %v1478
    %v1488 = vpop.permute.xlu0 %1487
    %v1490 = vmul.f32 %v1484, %v1488
    %v1491 = vlaneseq
    %v1492 = vshrl.u32 %v1491, 7
    %v1493 = vsub.s32 0, %v1492
    %v1494 = vrot.slane %v82, %v1493
    %v1496 = vsel %vm141, %v1490, 0
    %1498 = vmatprep.subr.mxu0 0.0
    %1499 = vmatpush1.msra.mxu0 %v74
    %1500 = vmatprep.subr.mxu0 0.0
    %1501 = vmatpush1.msra.mxu0 %v75
    %1502 = vmatprep.subr.mxu0 0.0
    %1503 = vmatpush1.msra.mxu0 %v76
    %1504 = vmatprep.subr.mxu0 0.0
    %1505 = vmatpush1.msra.mxu0 %v77
    %1506 = vmatprep.subr.mxu0 0.0
    %1507 = vmatpush1.msra.mxu0 %v78
    %1508 = vmatprep.subr.mxu0 0.0
    %1509 = vmatpush1.msra.mxu0 %v79
    %1510 = vmatprep.subr.mxu0 0.0
    %1511 = vmatpush1.msra.mxu0 %v80
    %1512 = vmatprep.subr.mxu0 0.0
    %1513 = vmatpush1.msra.mxu0 %v81
    %1514 = vmatprep.subr.mxu0 0.0
    %1515 = vmatpush1.msra.mxu0 0.0
    %1516 = vmatprep.subr.mxu0 0.0
    %1517 = vmatpush1.msra.mxu0 0.0
    %1518 = vmatprep.subr.mxu0 0.0
    %1519 = vmatpush1.msra.mxu0 0.0
    %1520 = vmatprep.subr.mxu0 0.0
    %1521 = vmatpush1.msra.mxu0 0.0
    %1522 = vmatprep.subr.mxu0 0.0
    %1523 = vmatpush1.msra.mxu0 0.0
    %1524 = vmatprep.subr.mxu0 0.0
    %1525 = vmatpush1.msra.mxu0 0.0
    %1526 = vmatprep.subr.mxu0 0.0
    %1527 = vmatpush1.msra.mxu0 0.0
    %1528 = vmatprep.subr.mxu0 0.0
    %1529 = vmatpush1.msra.mxu0 0.0
    %1530 = vmatprep.subr.mxu0 0.0
    %1531 = vmatpush1.msra.mxu0 0.0
    %1532 = vmatprep.subr.mxu0 0.0
    %1533 = vmatpush1.msra.mxu0 0.0
    %1534 = vmatprep.subr.mxu0 0.0
    %1535 = vmatpush1.msra.mxu0 0.0
    %1536 = vmatprep.subr.mxu0 0.0
    %1537 = vmatpush1.msra.mxu0 0.0
    %1538 = vmatprep.subr.mxu0 0.0
    %1539 = vmatpush1.msra.mxu0 0.0
    %1540 = vmatprep.subr.mxu0 0.0
    %1541 = vmatpush1.msra.mxu0 0.0
    %1542 = vmatprep.subr.mxu0 0.0
    %1543 = vmatpush1.msra.mxu0 0.0
    %1544 = vmatprep.subr.mxu0 0.0
    %1545 = vmatpush1.msra.mxu0 0.0
    %1546 = vmatprep.subr.mxu0 0.0
    %1547 = vmatpush1.msra.mxu0 0.0
    %1548 = vmatprep.subr.mxu0 0.0
    %1549 = vmatpush1.msra.mxu0 0.0
    %1550 = vmatprep.subr.mxu0 0.0
    %1551 = vmatpush1.msra.mxu0 0.0
    %1552 = vmatprep.subr.mxu0 0.0
    %1553 = vmatpush1.msra.mxu0 0.0
    %1554 = vmatprep.subr.mxu0 0.0
    %1555 = vmatpush1.msra.mxu0 0.0
    %1556 = vmatprep.subr.mxu0 0.0
    %1557 = vmatpush1.msra.mxu0 0.0
    %1558 = vmatprep.subr.mxu0 0.0
    %1559 = vmatpush1.msra.mxu0 0.0
    %1560 = vmatprep.subr.mxu0 0.0
    %1561 = vmatpush1.msra.mxu0 0.0
    %1562 = vmatprep.mubr.f32.mxu0 0.0
    %1563 = vmatmul.mubr.f32.gmra.mrb[0].mxu0 %v1496
    %v1564 = vpop.f32.mrb[0].mxu0
    %v1565 = vadd.f32 %v1494, %v1564
    %v1566 = vpop.f32.mrb[0].mxu0
    %1567 = vdwg.mxu0
    %vm1568 = vcmp.ge.f32.partialorder %v1565, 0.0
    %v1569 = vmul.f32 %v1565, 0.2
    %v1570 = vsel %vm1568, %v1565, %v1569
    %v1571 = vlaneseq
    %v1572 = vshrl.u32 %v1571, 7
    %v1573 = vsub.s32 0, %v1572
    %v1574 = vrot.slane %v91, %v1573
    %v1576 = vsel %vm141, %v1570, 0
    %1578 = vmatprep.subr.mxu0 0.0
    %1579 = vmatpush1.msra.mxu0 %v83
    %1580 = vmatprep.subr.mxu0 0.0
    %1581 = vmatpush1.msra.mxu0 %v84
    %1582 = vmatprep.subr.mxu0 0.0
    %1583 = vmatpush1.msra.mxu0 %v85
    %1584 = vmatprep.subr.mxu0 0.0
    %1585 = vmatpush1.msra.mxu0 %v86
    %1586 = vmatprep.subr.mxu0 0.0
    %1587 = vmatpush1.msra.mxu0 %v87
    %1588 = vmatprep.subr.mxu0 0.0
    %1589 = vmatpush1.msra.mxu0 %v88
    %1590 = vmatprep.subr.mxu0 0.0
    %1591 = vmatpush1.msra.mxu0 %v89
    %1592 = vmatprep.subr.mxu0 0.0
    %1593 = vmatpush1.msra.mxu0 %v90
    %1594 = vmatprep.subr.mxu0 0.0
    %1595 = vmatpush1.msra.mxu0 0.0
    %1596 = vmatprep.subr.mxu0 0.0
    %1597 = vmatpush1.msra.mxu0 0.0
    %1598 = vmatprep.subr.mxu0 0.0
    %1599 = vmatpush1.msra.mxu0 0.0
    %1600 = vmatprep.subr.mxu0 0.0
    %1601 = vmatpush1.msra.mxu0 0.0
    %1602 = vmatprep.subr.mxu0 0.0
    %1603 = vmatpush1.msra.mxu0 0.0
    %1604 = vmatprep.subr.mxu0 0.0
    %1605 = vmatpush1.msra.mxu0 0.0
    %1606 = vmatprep.subr.mxu0 0.0
    %1607 = vmatpush1.msra.mxu0 0.0
    %1608 = vmatprep.subr.mxu0 0.0
    %1609 = vmatpush1.msra.mxu0 0.0
    %1610 = vmatprep.subr.mxu0 0.0
    %1611 = vmatpush1.msra.mxu0 0.0
    %1612 = vmatprep.subr.mxu0 0.0
    %1613 = vmatpush1.msra.mxu0 0.0
    %1614 = vmatprep.subr.mxu0 0.0
    %1615 = vmatpush1.msra.mxu0 0.0
    %1616 = vmatprep.subr.mxu0 0.0
    %1617 = vmatpush1.msra.mxu0 0.0
    %1618 = vmatprep.subr.mxu0 0.0
    %1619 = vmatpush1.msra.mxu0 0.0
    %1620 = vmatprep.subr.mxu0 0.0
    %1621 = vmatpush1.msra.mxu0 0.0
    %1622 = vmatprep.subr.mxu0 0.0
    %1623 = vmatpush1.msra.mxu0 0.0
    %1624 = vmatprep.subr.mxu0 0.0
    %1625 = vmatpush1.msra.mxu0 0.0
    %1626 = vmatprep.subr.mxu0 0.0
    %1627 = vmatpush1.msra.mxu0 0.0
    %1628 = vmatprep.subr.mxu0 0.0
    %1629 = vmatpush1.msra.mxu0 0.0
    %1630 = vmatprep.subr.mxu0 0.0
    %1631 = vmatpush1.msra.mxu0 0.0
    %1632 = vmatprep.subr.mxu0 0.0
    %1633 = vmatpush1.msra.mxu0 0.0
    %1634 = vmatprep.subr.mxu0 0.0
    %1635 = vmatpush1.msra.mxu0 0.0
    %1636 = vmatprep.subr.mxu0 0.0
    %1637 = vmatpush1.msra.mxu0 0.0
    %1638 = vmatprep.subr.mxu0 0.0
    %1639 = vmatpush1.msra.mxu0 0.0
    %1640 = vmatprep.subr.mxu0 0.0
    %1641 = vmatpush1.msra.mxu0 0.0
    %1642 = vmatprep.mubr.f32.mxu0 0.0
    %1643 = vmatmul.mubr.f32.gmra.mrb[0].mxu0 %v1576
    %v1644 = vpop.f32.mrb[0].mxu0
    %v1645 = vadd.f32 %v1574, %v1644
    %v1646 = vpop.f32.mrb[0].mxu0
    %1647 = vdwg.mxu0
    %v1648 = vlaneseq
    %v1649 = vshrl.u32 %v1648, 7
    %v1650 = vsub.s32 0, %v1649
    %v1651 = vrot.slane %v108, %v1650
    %1652 = vmatprep.subr.mxu0 0.0
    %1653 = vmatpush1.msra.mxu0 %v92
    %1654 = vmatprep.subr.mxu0 0.0
    %1655 = vmatpush1.msra.mxu0 %v93
    %1656 = vmatprep.subr.mxu0 0.0
    %1657 = vmatpush1.msra.mxu0 %v94
    %1658 = vmatprep.subr.mxu0 0.0
    %1659 = vmatpush1.msra.mxu0 %v95
    %1660 = vmatprep.subr.mxu0 0.0
    %1661 = vmatpush1.msra.mxu0 %v96
    %1662 = vmatprep.subr.mxu0 0.0
    %1663 = vmatpush1.msra.mxu0 %v97
    %1664 = vmatprep.subr.mxu0 0.0
    %1665 = vmatpush1.msra.mxu0 %v98
    %1666 = vmatprep.subr.mxu0 0.0
    %1667 = vmatpush1.msra.mxu0 %v99
    %1668 = vmatprep.subr.mxu0 0.0
    %1669 = vmatpush1.msra.mxu0 %v100
    %1670 = vmatprep.subr.mxu0 0.0
    %1671 = vmatpush1.msra.mxu0 %v101
    %1672 = vmatprep.subr.mxu0 0.0
    %1673 = vmatpush1.msra.mxu0 %v102
    %1674 = vmatprep.subr.mxu0 0.0
    %1675 = vmatpush1.msra.mxu0 %v103
    %1676 = vmatprep.subr.mxu0 0.0
    %1677 = vmatpush1.msra.mxu0 %v104
    %1678 = vmatprep.subr.mxu0 0.0
    %1679 = vmatpush1.msra.mxu0 %v105
    %1680 = vmatprep.subr.mxu0 0.0
    %1681 = vmatpush1.msra.mxu0 %v106
    %1682 = vmatprep.subr.mxu0 0.0
    %1683 = vmatpush1.msra.mxu0 %v107
    %1684 = vmatprep.subr.mxu0 0.0
    %1685 = vmatpush1.msra.mxu0 0.0
    %1686 = vmatprep.subr.mxu0 0.0
    %1687 = vmatpush1.msra.mxu0 0.0
    %1688 = vmatprep.subr.mxu0 0.0
    %1689 = vmatpush1.msra.mxu0 0.0
    %1690 = vmatprep.subr.mxu0 0.0
    %1691 = vmatpush1.msra.mxu0 0.0
    %1692 = vmatprep.subr.mxu0 0.0
    %1693 = vmatpush1.msra.mxu0 0.0
    %1694 = vmatprep.subr.mxu0 0.0
    %1695 = vmatpush1.msra.mxu0 0.0
    %1696 = vmatprep.subr.mxu0 0.0
    %1697 = vmatpush1.msra.mxu0 0.0
    %1698 = vmatprep.subr.mxu0 0.0
    %1699 = vmatpush1.msra.mxu0 0.0
    %1700 = vmatprep.subr.mxu0 0.0
    %1701 = vmatpush1.msra.mxu0 0.0
    %1702 = vmatprep.subr.mxu0 0.0
    %1703 = vmatpush1.msra.mxu0 0.0
    %1704 = vmatprep.subr.mxu0 0.0
    %1705 = vmatpush1.msra.mxu0 0.0
    %1706 = vmatprep.subr.mxu0 0.0
    %1707 = vmatpush1.msra.mxu0 0.0
    %1708 = vmatprep.subr.mxu0 0.0
    %1709 = vmatpush1.msra.mxu0 0.0
    %1710 = vmatprep.subr.mxu0 0.0
    %1711 = vmatpush1.msra.mxu0 0.0
    %1712 = vmatprep.subr.mxu0 0.0
    %1713 = vmatpush1.msra.mxu0 0.0
    %1714 = vmatprep.subr.mxu0 0.0
    %1715 = vmatpush1.msra.mxu0 0.0
    %1716 = vmatprep.mubr.f32.mxu0 0.0
    %1717 = vmatmul.mubr.f32.gmra.mrb[0].mxu0 %v28
    %v1718 = vpop.f32.mrb[0].mxu0
    %v1719 = vadd.f32 %v1651, %v1718
    %v1720 = vpop.f32.mrb[0].mxu0
    %1721 = vdwg.mxu0
    %vm1722 = vcmp.ge.f32.partialorder %v1719, 0.0
    %v1723 = vmul.f32 %v1719, 0.2
    %v1724 = vsel %vm1722, %v1719, %v1723
    %v1725 = vlaneseq
    %v1726 = vshrl.u32 %v1725, 7
    %v1727 = vsub.s32 0, %v1726
    %v1728 = vrot.slane %v117, %v1727
    %v1730 = vsel %vm141, %v1724, 0
    %1732 = vmatprep.subr.mxu0 0.0
    %1733 = vmatpush1.msra.mxu0 %v109
    %1734 = vmatprep.subr.mxu0 0.0
    %1735 = vmatpush1.msra.mxu0 %v110
    %1736 = vmatprep.subr.mxu0 0.0
    %1737 = vmatpush1.msra.mxu0 %v111
    %1738 = vmatprep.subr.mxu0 0.0
    %1739 = vmatpush1.msra.mxu0 %v112
    %1740 = vmatprep.subr.mxu0 0.0
    %1741 = vmatpush1.msra.mxu0 %v113
    %1742 = vmatprep.subr.mxu0 0.0
    %1743 = vmatpush1.msra.mxu0 %v114
    %1744 = vmatprep.subr.mxu0 0.0
    %1745 = vmatpush1.msra.mxu0 %v115
    %1746 = vmatprep.subr.mxu0 0.0
    %1747 = vmatpush1.msra.mxu0 %v116
    %1748 = vmatprep.subr.mxu0 0.0
    %1749 = vmatpush1.msra.mxu0 0.0
    %1750 = vmatprep.subr.mxu0 0.0
    %1751 = vmatpush1.msra.mxu0 0.0
    %1752 = vmatprep.subr.mxu0 0.0
    %1753 = vmatpush1.msra.mxu0 0.0
    %1754 = vmatprep.subr.mxu0 0.0
    %1755 = vmatpush1.msra.mxu0 0.0
    %1756 = vmatprep.subr.mxu0 0.0
    %1757 = vmatpush1.msra.mxu0 0.0
    %1758 = vmatprep.subr.mxu0 0.0
    %1759 = vmatpush1.msra.mxu0 0.0
    %1760 = vmatprep.subr.mxu0 0.0
    %1761 = vmatpush1.msra.mxu0 0.0
    %1762 = vmatprep.subr.mxu0 0.0
    %1763 = vmatpush1.msra.mxu0 0.0
    %1764 = vmatprep.subr.mxu0 0.0
    %1765 = vmatpush1.msra.mxu0 0.0
    %1766 = vmatprep.subr.mxu0 0.0
    %1767 = vmatpush1.msra.mxu0 0.0
    %1768 = vmatprep.subr.mxu0 0.0
    %1769 = vmatpush1.msra.mxu0 0.0
    %1770 = vmatprep.subr.mxu0 0.0
    %1771 = vmatpush1.msra.mxu0 0.0
    %1772 = vmatprep.subr.mxu0 0.0
    %1773 = vmatpush1.msra.mxu0 0.0
    %1774 = vmatprep.subr.mxu0 0.0
    %1775 = vmatpush1.msra.mxu0 0.0
    %1776 = vmatprep.subr.mxu0 0.0
    %1777 = vmatpush1.msra.mxu0 0.0
    %1778 = vmatprep.subr.mxu0 0.0
    %1779 = vmatpush1.msra.mxu0 0.0
    %1780 = vmatprep.subr.mxu0 0.0
    %1781 = vmatpush1.msra.mxu0 0.0
    %1782 = vmatprep.subr.mxu0 0.0
    %1783 = vmatpush1.msra.mxu0 0.0
    %1784 = vmatprep.subr.mxu0 0.0
    %1785 = vmatpush1.msra.mxu0 0.0
    %1786 = vmatprep.subr.mxu0 0.0
    %1787 = vmatpush1.msra.mxu0 0.0
    %1788 = vmatprep.subr.mxu0 0.0
    %1789 = vmatpush1.msra.mxu0 0.0
    %1790 = vmatprep.subr.mxu0 0.0
    %1791 = vmatpush1.msra.mxu0 0.0
    %1792 = vmatprep.subr.mxu0 0.0
    %1793 = vmatpush1.msra.mxu0 0.0
    %1794 = vmatprep.subr.mxu0 0.0
    %1795 = vmatpush1.msra.mxu0 0.0
    %1796 = vmatprep.mubr.f32.mxu0 0.0
    %1797 = vmatmul.mubr.f32.gmra.mrb[0].mxu0 %v1730
    %v1798 = vpop.f32.mrb[0].mxu0
    %v1799 = vadd.f32 %v1728, %v1798
    %v1800 = vpop.f32.mrb[0].mxu0
    %1801 = vdwg.mxu0
    %v1802 = vadd.f32 %v1645, %v292
    %v1803 = vlaneseq
    %v1804 = vshrl.u32 %v1803, 7
    %v1805 = vsub.s32 0, %v1804
    %v1806 = vrot.slane %v126, %v1805
    %v1808 = vsel %vm141, %v1802, 0
    %1810 = vmatprep.subr.mxu0 0.0
    %1811 = vmatpush1.msra.mxu0 %v118
    %1812 = vmatprep.subr.mxu0 0.0
    %1813 = vmatpush1.msra.mxu0 %v119
    %1814 = vmatprep.subr.mxu0 0.0
    %1815 = vmatpush1.msra.mxu0 %v120
    %1816 = vmatprep.subr.mxu0 0.0
    %1817 = vmatpush1.msra.mxu0 %v121
    %1818 = vmatprep.subr.mxu0 0.0
    %1819 = vmatpush1.msra.mxu0 %v122
    %1820 = vmatprep.subr.mxu0 0.0
    %1821 = vmatpush1.msra.mxu0 %v123
    %1822 = vmatprep.subr.mxu0 0.0
    %1823 = vmatpush1.msra.mxu0 %v124
    %1824 = vmatprep.subr.mxu0 0.0
    %1825 = vmatpush1.msra.mxu0 %v125
    %1826 = vmatprep.subr.mxu0 0.0
    %1827 = vmatpush1.msra.mxu0 0.0
    %1828 = vmatprep.subr.mxu0 0.0
    %1829 = vmatpush1.msra.mxu0 0.0
    %1830 = vmatprep.subr.mxu0 0.0
    %1831 = vmatpush1.msra.mxu0 0.0
    %1832 = vmatprep.subr.mxu0 0.0
    %1833 = vmatpush1.msra.mxu0 0.0
    %1834 = vmatprep.subr.mxu0 0.0
    %1835 = vmatpush1.msra.mxu0 0.0
    %1836 = vmatprep.subr.mxu0 0.0
    %1837 = vmatpush1.msra.mxu0 0.0
    %1838 = vmatprep.subr.mxu0 0.0
    %1839 = vmatpush1.msra.mxu0 0.0
    %1840 = vmatprep.subr.mxu0 0.0
    %1841 = vmatpush1.msra.mxu0 0.0
    %1842 = vmatprep.subr.mxu0 0.0
    %1843 = vmatpush1.msra.mxu0 0.0
    %1844 = vmatprep.subr.mxu0 0.0
    %1845 = vmatpush1.msra.mxu0 0.0
    %1846 = vmatprep.subr.mxu0 0.0
    %1847 = vmatpush1.msra.mxu0 0.0
    %1848 = vmatprep.subr.mxu0 0.0
    %1849 = vmatpush1.msra.mxu0 0.0
    %1850 = vmatprep.subr.mxu0 0.0
    %1851 = vmatpush1.msra.mxu0 0.0
    %1852 = vmatprep.subr.mxu0 0.0
    %1853 = vmatpush1.msra.mxu0 0.0
    %1854 = vmatprep.subr.mxu0 0.0
    %1855 = vmatpush1.msra.mxu0 0.0
    %1856 = vmatprep.subr.mxu0 0.0
    %1857 = vmatpush1.msra.mxu0 0.0
    %1858 = vmatprep.subr.mxu0 0.0
    %1859 = vmatpush1.msra.mxu0 0.0
    %1860 = vmatprep.subr.mxu0 0.0
    %1861 = vmatpush1.msra.mxu0 0.0
    %1862 = vmatprep.subr.mxu0 0.0
    %1863 = vmatpush1.msra.mxu0 0.0
    %1864 = vmatprep.subr.mxu0 0.0
    %1865 = vmatpush1.msra.mxu0 0.0
    %1866 = vmatprep.subr.mxu0 0.0
    %1867 = vmatpush1.msra.mxu0 0.0
    %1868 = vmatprep.subr.mxu0 0.0
    %1869 = vmatpush1.msra.mxu0 0.0
    %1870 = vmatprep.subr.mxu0 0.0
    %1871 = vmatpush1.msra.mxu0 0.0
    %1872 = vmatprep.subr.mxu0 0.0
    %1873 = vmatpush1.msra.mxu0 0.0
    %1874 = vmatprep.mubr.f32.mxu0 0.0
    %1875 = vmatmul.mubr.f32.gmra.mrb[0].mxu0 %v1808
    %v1876 = vpop.f32.mrb[0].mxu0
    %v1877 = vadd.f32 %v1806, %v1876
    %v1878 = vpop.f32.mrb[0].mxu0
    %1879 = vdwg.mxu0
    %vm1880 = vcmp.ge.f32.partialorder %v1877, 0.0
    %v1881 = vmul.f32 %v1877, 0.2
    %v1882 = vsel %vm1880, %v1877, %v1881
    %v1883 = vlaneseq
    %v1884 = vshrl.u32 %v1883, 7
    %v1885 = vsub.s32 0, %v1884
    %v1886 = vrot.slane %v135, %v1885
    %v1888 = vsel %vm141, %v1882, 0
    %1890 = vmatprep.subr.mxu0 0.0
    %1891 = vmatpush1.msra.mxu0 %v127
    %1892 = vmatprep.subr.mxu0 0.0
    %1893 = vmatpush1.msra.mxu0 %v128
    %1894 = vmatprep.subr.mxu0 0.0
    %1895 = vmatpush1.msra.mxu0 %v129
    %1896 = vmatprep.subr.mxu0 0.0
    %1897 = vmatpush1.msra.mxu0 %v130
    %1898 = vmatprep.subr.mxu0 0.0
    %1899 = vmatpush1.msra.mxu0 %v131
    %1900 = vmatprep.subr.mxu0 0.0
    %1901 = vmatpush1.msra.mxu0 %v132
    %1902 = vmatprep.subr.mxu0 0.0
    %1903 = vmatpush1.msra.mxu0 %v133
    %1904 = vmatprep.subr.mxu0 0.0
    %1905 = vmatpush1.msra.mxu0 %v134
    %1906 = vmatprep.subr.mxu0 0.0
    %1907 = vmatpush1.msra.mxu0 0.0
    %1908 = vmatprep.subr.mxu0 0.0
    %1909 = vmatpush1.msra.mxu0 0.0
    %1910 = vmatprep.subr.mxu0 0.0
    %1911 = vmatpush1.msra.mxu0 0.0
    %1912 = vmatprep.subr.mxu0 0.0
    %1913 = vmatpush1.msra.mxu0 0.0
    %1914 = vmatprep.subr.mxu0 0.0
    %1915 = vmatpush1.msra.mxu0 0.0
    %1916 = vmatprep.subr.mxu0 0.0
    %1917 = vmatpush1.msra.mxu0 0.0
    %1918 = vmatprep.subr.mxu0 0.0
    %1919 = vmatpush1.msra.mxu0 0.0
    %1920 = vmatprep.subr.mxu0 0.0
    %1921 = vmatpush1.msra.mxu0 0.0
    %1922 = vmatprep.subr.mxu0 0.0
    %1923 = vmatpush1.msra.mxu0 0.0
    %1924 = vmatprep.subr.mxu0 0.0
    %1925 = vmatpush1.msra.mxu0 0.0
    %1926 = vmatprep.subr.mxu0 0.0
    %1927 = vmatpush1.msra.mxu0 0.0
    %1928 = vmatprep.subr.mxu0 0.0
    %1929 = vmatpush1.msra.mxu0 0.0
    %1930 = vmatprep.subr.mxu0 0.0
    %1931 = vmatpush1.msra.mxu0 0.0
    %1932 = vmatprep.subr.mxu0 0.0
    %1933 = vmatpush1.msra.mxu0 0.0
    %1934 = vmatprep.subr.mxu0 0.0
    %1935 = vmatpush1.msra.mxu0 0.0
    %1936 = vmatprep.subr.mxu0 0.0
    %1937 = vmatpush1.msra.mxu0 0.0
    %1938 = vmatprep.subr.mxu0 0.0
    %1939 = vmatpush1.msra.mxu0 0.0
    %1940 = vmatprep.subr.mxu0 0.0
    %1941 = vmatpush1.msra.mxu0 0.0
    %1942 = vmatprep.subr.mxu0 0.0
    %1943 = vmatpush1.msra.mxu0 0.0
    %1944 = vmatprep.subr.mxu0 0.0
    %1945 = vmatpush1.msra.mxu0 0.0
    %1946 = vmatprep.subr.mxu0 0.0
    %1947 = vmatpush1.msra.mxu0 0.0
    %1948 = vmatprep.subr.mxu0 0.0
    %1949 = vmatpush1.msra.mxu0 0.0
    %1950 = vmatprep.subr.mxu0 0.0
    %1951 = vmatpush1.msra.mxu0 0.0
    %1952 = vmatprep.subr.mxu0 0.0
    %1953 = vmatpush1.msra.mxu0 0.0
    %1954 = vmatprep.mubr.f32.mxu0 0.0
    %1955 = vmatmul.mubr.f32.gmra.mrb[0].mxu0 %v1888
    %v1956 = vpop.f32.mrb[0].mxu0
    %v1957 = vadd.f32 %v1886, %v1956
    %v1958 = vpop.f32.mrb[0].mxu0
    %1959 = vdwg.mxu0
    %1960 = vst [vmem:[#allocation2] sm:$0xff] %v1957
    %v1961 = vand.u32 2147483647, %v28
    %v1962 = vlaneseq
    %v1963 = vshrl.u32 %v1962, 7
    %v1964 = vsub.s32 0, %v1963
    %v1965 = vrot.slane %v29, %v1964
    %v1966 = vmul.f32 %v1961, %v1965
    %1967 = vadd.xlane.f32.xlu0 %v1966
    %v1968 = vpop.xlane.xlu0 %1967
    %v1969 = vmul.f32 %v1968, 0.1
    %v1970 = vand.u32 2147483647, %v1957
    %v1971 = vmul.f32 %v1970, %v1965
    %1972 = vadd.xlane.f32.xlu0 %v1971
    %v1973 = vpop.xlane.xlu0 %1972
    %v1974 = vmul.f32 %v1973, 0.1
    %v1975 = vsub.f32 %v1974, %v1969
    %v1976 = vmul.f32 %v1975, %v1975
    %v1977 = vadd.f32 %v1976, 0.0
    %v1978 = vrot.slane %v1977, 4
    %v1979 = vadd.f32 %v1977, %v1978
    %v1980 = vrot.slane %v1979, 2
    %v1981 = vadd.f32 %v1979, %v1980
    %v1982 = vrot.slane %v1981, 1
    %v1983 = vadd.f32 %v1981, %v1982
    %v1984 = vmul.f32 %v1983, 0.125
    %v1985 = vsub.f32 %v1957, %v28
    %v1986 = vmul.f32 %v1985, %v1985
    %1987 = vadd.xlane.f32.xlu0 %v1986
    %v1988 = vpop.xlane.xlu0 %1987
    %v1989 = vrot.slane %v1988, 4
    %v1990 = vadd.f32 %v1988, %v1989
    %v1991 = vrot.slane %v1990, 2
    %v1992 = vadd.f32 %v1990, %v1991
    %v1993 = vrot.slane %v1992, 1
    %v1994 = vadd.f32 %v1992, %v1993
    %v1995 = vmul.f32 %v1994, 0.0009765625
    %v1996 = vmul.f32 %v1645, %v1799
    %v1997 = vsel %vm141, %v1996, 0.0
    %1998 = vadd.xlane.f32.xlu0 %v1997
    %v1999 = vpop.xlane.xlu0 %1998
    %v2000 = vrot.slane %v1999, 4
    %v2001 = vadd.f32 %v1999, %v2000
    %v2002 = vrot.slane %v2001, 2
    %v2003 = vadd.f32 %v2001, %v2002
    %v2004 = vrot.slane %v2003, 1
    %v2005 = vadd.f32 %v2003, %v2004
    %v2006 = vmul.f32 %v1645, %v1645
    %v2007 = vsel %vm141, %v2006, 0.0
    %2008 = vadd.xlane.f32.xlu0 %v2007
    %v2009 = vpop.xlane.xlu0 %2008
    %v2010 = vrot.slane %v2009, 4
    %v2011 = vadd.f32 %v2009, %v2010
    %v2012 = vrot.slane %v2011, 2
    %v2013 = vadd.f32 %v2011, %v2012
    %v2014 = vrot.slane %v2013, 1
    %v2015 = vadd.f32 %v2013, %v2014
    %v2016 = vmul.f32 %v1799, %v1799
    %v2017 = vsel %vm141, %v2016, 0.0
    %2018 = vadd.xlane.f32.xlu0 %v2017
    %v2019 = vpop.xlane.xlu0 %2018
    %v2020 = vrot.slane %v2019, 4
    %v2021 = vadd.f32 %v2019, %v2020
    %v2022 = vrot.slane %v2021, 2
    %v2023 = vadd.f32 %v2021, %v2022
    %v2024 = vrot.slane %v2023, 1
    %v2025 = vadd.f32 %v2023, %v2024
    %v2026 = vmax.f32 %v2015, 1e-16
    %v2027 = vrsqrt.pop %v2026
    %v2028 = vmul.f32 %v2005, %v2027
    %v2029 = vmax.f32 %v2025, 1e-16
    %v2030 = vrsqrt.pop %v2029
    %v2031 = vmul.f32 %v2028, %v2030
    %v2032 = vsub.f32 1.0, %v2031
    %v2033 = vmul.f32 %v2032, 0.1
    %v2034 = vadd.f32 %v1995, %v2033
    %v2035 = vmul.f32 %v1984, 0.1
    %v2036 = vadd.f32 %v2034, %v2035
    %v2037 = vlaneseq
    %v2038 = vand.u32 %v2037, 127
    %vm2039 = vcmp.eq.s32.totalorder %v2038, 0
    %v2040 = vsel %vm2039, %v1995, 0.0
    %vm2041 = vcmp.eq.s32.totalorder %v2038, 1
    %v2042 = vsel %vm2041, %v2032, 0.0
    %v2043 = vadd.f32 %v2040, %v2042
    %vm2044 = vcmp.eq.s32.totalorder %v2038, 2
    %v2045 = vsel %vm2044, %v1984, 0.0
    %v2046 = vadd.f32 %v2043, %v2045
    %vm2047 = vcmp.eq.s32.totalorder %v2038, 3
    %v2048 = vsel %vm2047, %v2036, 0.0
    %v2049 = vadd.f32 %v2046, %v2048
    %2050 = vst [vmem:[#allocation4] sm:$0x1] %v2049
    // Predicated region
    $region18: #{tpu_custom_call.1} parent=1 // pred_check
      _
    $region19: #{tpu_custom_call.1} parent=1 // pred_check_branch
      %2052 = sbr.rel (0) target = $region21
    $region20: #{tpu_custom_call.1} parent=1 // pred_region
      %s2054 = ssub.s32 128, 128
      %2055 = vsyncadd [#allocation3], %s2054
      %s2057 = sshll.u32 [#allocation2], 4
      %s2058 = int_to_ptr.vmem [resolvable:$true] %s2057
      %2060 = dma.vmem_to_hbm [thread:$0]  %s2058, 128, %s4, [#allocation3]
    $region21: #{tpu_custom_call.1} parent=1 // pred_fallthru
      _
    // Predicated region
    $region22: #{tpu_custom_call.1} parent=1 // pred_check
      _
    $region23: #{tpu_custom_call.1} parent=1 // pred_check_branch
      %2062 = sbr.rel (0) target = $region25
    $region24: #{tpu_custom_call.1} parent=1 // pred_region
      %s2064 = ssub.s32 16, 16
      %2065 = vsyncadd [#allocation5], %s2064
      %s2067 = sshll.u32 [#allocation4], 4
      %s2068 = int_to_ptr.vmem [resolvable:$true] %s2067
      %2070 = dma.vmem_to_hbm [thread:$0]  %s2068, 16, %s5, [#allocation5]
    $region25: #{tpu_custom_call.1} parent=1 // pred_fallthru
      _
    // Predicated region
    $region26: #{tpu_custom_call.1} parent=1 // pred_check
      _
    $region27: #{tpu_custom_call.1} parent=1 // pred_check_branch
      %2072 = sbr.rel (0) target = $region29
    $region28: #{tpu_custom_call.1} parent=1 // pred_region
      %2073 = dma.done [#allocation3], 128
    $region29: #{tpu_custom_call.1} parent=1 // pred_fallthru
      _
    // Predicated region
    $region30: #{tpu_custom_call.1} parent=1 // pred_check
      _
    $region31: #{tpu_custom_call.1} parent=1 // pred_check_branch
      %2075 = sbr.rel (0) target = $region33
    $region32: #{tpu_custom_call.1} parent=1 // pred_region
      %2076 = dma.done [#allocation5], 16
    $region33: #{tpu_custom_call.1} parent=1 // pred_fallthru
      _
    %2077 = vsyncpa [#allocation3], 1
    %2078 = vsyncpa [#allocation5], 1

</llo_original>
